<compile_context>
chip_gen: v5e
topology: v5e:2x2
jax: 0.10.0
libtpu: 0.0.40
codegen_flags: <defaults>
</compile_context>

<pallas_src>
import jax
import jax.numpy as jnp
from jax.experimental import pallas as pl
from jax.experimental.pallas import tpu as pltpu

FEAT_DIM = 1000            # efficientnet_b0 logits dim (true backbone output width)
FEAT_PAD = 1024            # lane-aligned padded feature dim
HIDDEN = 256               # fc1 output width
MAX_SPATIAL_LANES = 32768  # cap on lane tile (bounds unroll length / buffer size)


def _round_up(x, m):
    return (x + m - 1) // m * m


def _vmem_plan():
    """(vmem_limit_bytes, input double-buffer budget) per TPU generation."""
    kind = ""
    try:
        kind = jax.devices()[0].device_kind.lower()
    except Exception:
        pass
    if ("v5" in kind) or ("v6" in kind):          # 128 MiB physical VMEM
        return 96 * 1024 * 1024, 48 * 1024 * 1024
    # conservative default sized for v7x's 64 MiB per-TensorCore VMEM
    return 40 * 1024 * 1024, 20 * 1024 * 1024


def _pick_batch_tile(b, cap=128):
    """Batch tile. Prefer >=2 multiple-of-8 blocks (v7x megacore); else b."""
    if b < 16:
        return b
    t = min(cap, b // 2)
    t -= t % 8
    while t >= 8:                      # >=2 blocks, multiple of 8, divides b
        if b % t == 0:
            return t
        t -= 8
    t = min(cap, b)
    t -= t % 8
    while t >= 8:                      # fallback: any multiple-of-8 divisor
        if b % t == 0:
            return t
        t -= 8
    return b


def _pick_spatial_tile(hw, max_tile):
    """Lane tile: multiple of 128, <= max_tile, minimal zero-padding waste."""
    hw128 = _round_up(hw, 128)
    cap = max(128, min((max_tile // 128) * 128, hw128))
    n = hw128 // 128
    best = 128
    for d in range(1, n + 1):
        if n % d == 0 and d * 128 <= cap:
            best = d * 128
    if best * 8 >= cap:
        return best                    # near-cap divisor tile: zero extra padding
    # hw128 has no large multiple-of-128 divisor <= cap: accept <= ~1/8 padding.
    return min(cap, max(best, _round_up(max(hw128 // 8, 128), 128)))


def _make_kernel(n_chunks, cpad):
    def kernel(x_ref, wb_ref, bb_ref, w1_ref, b1_ref, w2_ref, b2_ref,
               o_ref, chunk_acc, pool_acc):
        # grid = (batch blocks [parallel], channel [arbitrary], spatial [arbitrary])
        c = pl.program_id(1)
        k = pl.program_id(2)
        nc = pl.num_programs(1)
        nk = pl.num_programs(2)

        @pl.when(jnp.logical_and(c == 0, k == 0))
        def _():
            pool_acc[...] = jnp.zeros_like(pool_acc)

        @pl.when(k == 0)
        def _():
            chunk_acc[...] = jnp.zeros_like(chunk_acc)

        # Steady state: VPU-only lane-chunk accumulation of the bf16 tile into
        # an f32 (tb, 128) accumulator. No cross-lane reduce in the hot loop.
        acc = chunk_acc[...]
        for j in range(n_chunks):
            acc = acc + x_ref[:, j * 128:(j + 1) * 128].astype(jnp.float32)
        chunk_acc[...] = acc

        @pl.when(k == nk - 1)
        def _():
            # One cross-lane reduce per (batch block, channel); scatter the
            # per-channel spatial SUM into lane `c` of the pooled accumulator.
            part = jnp.sum(chunk_acc[...], axis=-1, keepdims=True)      # (tb, 1)
            lane = jax.lax.broadcasted_iota(jnp.int32, (1, cpad), 1)
            pool_acc[...] += jnp.where(lane == c, part, 0.0)

        @pl.when(jnp.logical_and(c == nc - 1, k == nk - 1))
        def _():
            feat = pool_acc[...]                                         # (tb, cpad) f32
            # backbone stand-in: pooled linear C -> 1024 (1000 + zero pad), f32
            h = jnp.dot(feat, wb_ref[...],
                        preferred_element_type=jnp.float32) + bb_ref[...]
            # fc1: 1024(=1000 padded) -> 256, no activation (matches forward)
            h = jnp.dot(h, w1_ref[...],
                        preferred_element_type=jnp.float32) + b1_ref[...]
            # fc2: 256 -> padded num_classes
            out = jnp.dot(h, w2_ref[...],
                          preferred_element_type=jnp.float32) + b2_ref[...]
            o_ref[...] = out.astype(o_ref.dtype)

    return kernel


def base_model_forward(x_nchw, params, num_classes, *, max_spatial_tile=None):
    """x_nchw: (B, C, H, W). Returns (B, num_classes) f32."""
    B, C, H, W = x_nchw.shape
    HW = H * W
    wb, bb, w1, b1, w2, b2 = params
    cpad = wb.shape[0]                  # lane-padded channel count (>= C)
    ncp = w2.shape[1]                   # lane-padded class count

    vmem_limit, in_budget = _vmem_plan()
    tb = _pick_batch_tile(B)
    rows_p = max(_round_up(tb, 8), 8)   # sublane-padded rows of one input buffer
    budget_tile = max(128, in_budget // (2 * rows_p * 2))   # bf16, double-buffered
    cap = min(budget_tile, MAX_SPATIAL_LANES)
    if max_spatial_tile is not None:
        cap = min(cap, max_spatial_tile)
    ts = _pick_spatial_tile(HW, cap)
    hw_p = _round_up(HW, ts)
    nk = hw_p // ts

    # Host-side prep: bf16 stream, per-channel zero-pad to hw_p, flatten 2D.
    x3 = x_nchw.reshape(B, C, HW).astype(jnp.bfloat16)
    if hw_p != HW:
        x3 = jnp.pad(x3, ((0, 0), (0, 0), (0, hw_p - HW)))
    x2 = x3.reshape(B, C * hw_p)

    grid = (B // tb, C, nk)

    flops = B * C * hw_p + 2 * B * (cpad * FEAT_PAD + FEAT_PAD * HIDDEN + HIDDEN * ncp)
    bytes_accessed = (x2.size * 2
                      + (wb.size + w1.size + w2.size + bb.size + b1.size + b2.size) * 4
                      + B * ncp * 4)

    kernel = _make_kernel(ts // 128, cpad)

    out_padded = pl.pallas_call(
        kernel,
        out_shape=jax.ShapeDtypeStruct((B, ncp), jnp.float32),
        grid_spec=pltpu.PrefetchScalarGridSpec(
            num_scalar_prefetch=0,
            grid=grid,
            in_specs=[
                # image tile: dense (tb, ts) bf16, pipelined over channel+spatial
                pl.BlockSpec((tb, ts), lambda b, c, k: (b, c * nk + k)),
                # weights / biases: constant index maps -> resident across grid
                pl.BlockSpec(wb.shape, lambda b, c, k: (0, 0)),
                pl.BlockSpec(bb.shape, lambda b, c, k: (0, 0)),
                pl.BlockSpec(w1.shape, lambda b, c, k: (0, 0)),
                pl.BlockSpec(b1.shape, lambda b, c, k: (0, 0)),
                pl.BlockSpec(w2.shape, lambda b, c, k: (0, 0)),
                pl.BlockSpec(b2.shape, lambda b, c, k: (0, 0)),
            ],
            # same output block across the reduction axes -> resident output
            out_specs=pl.BlockSpec((tb, ncp), lambda b, c, k: (b, 0)),
            scratch_shapes=[
                pltpu.VMEM((tb, 128), jnp.float32),    # per-channel lane-chunk acc
                pltpu.VMEM((tb, cpad), jnp.float32),   # pooled per-channel sums
            ],
        ),
        compiler_params=pltpu.CompilerParams(
            dimension_semantics=("parallel", "arbitrary", "arbitrary"),
            vmem_limit_bytes=vmem_limit,
        ),
        cost_estimate=pl.CostEstimate(
            flops=flops, transcendentals=0, bytes_accessed=bytes_accessed),
    )(x2, wb, bb, w1, b1, w2, b2)

    return out_padded[:, :num_classes]


def init_params(key, in_channels, num_classes, hw):
    """Deterministic synthetic parameters, pre-laid-out for the kernel:
    - channel dim zero-padded to a multiple of 128 (pooled-accumulator lanes)
    - feature dim zero-padded 1000 -> 1024; num_classes padded to multiple of 128
    - 1/(H*W) mean scale folded into wb (kernel accumulates a spatial SUM)
    - head weights stay f32 (tiny & resident; avoids bf16 on the large pooled SUM)
    """
    k = jax.random.split(key, 6)
    ncp = _round_up(max(num_classes, 1), 128)
    cpad = _round_up(max(in_channels, 1), 128)

    wb = jax.random.normal(k[0], (in_channels, FEAT_DIM), jnp.float32) * 0.02
    bb = jax.random.normal(k[1], (FEAT_DIM,), jnp.float32) * 0.02
    w1 = jax.random.normal(k[2], (FEAT_DIM, HIDDEN), jnp.float32) * 0.02
    b1 = jax.random.normal(k[3], (HIDDEN,), jnp.float32) * 0.02
    w2 = jax.random.normal(k[4], (HIDDEN, num_classes), jnp.float32) * 0.02
    b2 = jax.random.normal(k[5], (num_classes,), jnp.float32) * 0.02

    # One-time constant fold: mean pool == (sum pool) @ (wb / (H*W)).
    wb = wb / float(hw)

    wb_p = jnp.zeros((cpad, FEAT_PAD), jnp.float32).at[:in_channels, :FEAT_DIM].set(wb)
    bb_p = jnp.zeros((1, FEAT_PAD), jnp.float32).at[0, :FEAT_DIM].set(bb)
    w1_p = jnp.zeros((FEAT_PAD, HIDDEN), jnp.float32).at[:FEAT_DIM, :].set(w1)
    b1_p = b1.reshape(1, HIDDEN)
    w2_p = jnp.zeros((HIDDEN, ncp), jnp.float32).at[:, :num_classes].set(w2)
    b2_p = jnp.zeros((1, ncp), jnp.float32).at[0, :num_classes].set(b2)

    return (wb_p, bb_p, w1_p, b1_p, w2_p, b2_p)


if __name__ == "__main__":
    key = jax.random.PRNGKey(0)
    B, C, H, W = 2, 3, 16, 16
    num_classes = 10

    kx, kp = jax.random.split(key)
    x = jax.random.normal(kx, (B, C, H, W), jnp.float32)
    params = init_params(kp, C, num_classes, H * W)

    # max_spatial_tile=128 forces 2 spatial steps per channel at this toy size so
    # the per-channel chunk reset / pooled-accumulate / finalize path is exercised.
    out = base_model_forward(x, params, num_classes, max_spatial_tile=128)
    out = jax.block_until_ready(out)
    assert out.shape == (B, num_classes), out.shape
    assert out.dtype == jnp.float32

    # Pure-JAX reference of the same math (bf16 input stream, f32 head weights,
    # sum-pool with the 1/(H*W) scale folded into wb).
    wb, bb, w1, b1, w2, b2 = params
    xb = x.reshape(B, C, H * W).astype(jnp.bfloat16).astype(jnp.float32)
    feat = jnp.sum(xb, axis=-1)                                       # (B, C)
    featp = jnp.zeros((B, wb.shape[0]), jnp.float32).at[:, :C].set(feat)
    h = jnp.dot(featp, wb) + bb
    h = jnp.dot(h, w1) + b1
    ref = (jnp.dot(h, w2) + b2)[:, :num_classes]
    assert jnp.allclose(out, ref, atol=1e-3, rtol=2e-2), float(jnp.max(jnp.abs(out - ref)))

    print("KERNEL_OK")
</pallas_src>

<mosaic_0001>
module attributes {stable_mosaic.version = 11 : i64} {
  func.func @kernel(%arg0: i32, %arg1: i32, %arg2: i32, %arg3: memref<2x128xbf16, #tpu.memory_space<vmem>>, %arg4: memref<128x1024xf32, #tpu.memory_space<vmem>>, %arg5: memref<1x1024xf32, #tpu.memory_space<vmem>>, %arg6: memref<1024x256xf32, #tpu.memory_space<vmem>>, %arg7: memref<1x256xf32, #tpu.memory_space<vmem>>, %arg8: memref<256x128xf32, #tpu.memory_space<vmem>>, %arg9: memref<1x128xf32, #tpu.memory_space<vmem>>, %arg10: memref<2x128xf32, #tpu.memory_space<vmem>>, %arg11: memref<2x128xf32, #tpu.memory_space<vmem>>, %arg12: memref<2x128xf32, #tpu.memory_space<vmem>>) attributes {dimension_semantics = [#tpu.dimension_semantics<parallel>, #tpu.dimension_semantics<arbitrary>, #tpu.dimension_semantics<arbitrary>], iteration_bounds = array<i64: 1, 3, 2>, scalar_prefetch = 0 : i64, scratch_operands = 2 : i64, tpu.core_type = #tpu.core_type<tc>, window_params = [{transform_indices = @transform_0, window_bounds = array<i64: 2, 128>}, {pipeline_mode = #tpu.pipeline_mode<synchronous>, transform_indices = @transform_1, window_bounds = array<i64: 128, 1024>}, {pipeline_mode = #tpu.pipeline_mode<synchronous>, transform_indices = @transform_2, window_bounds = array<i64: 1, 1024>}, {pipeline_mode = #tpu.pipeline_mode<synchronous>, transform_indices = @transform_3, window_bounds = array<i64: 1024, 256>}, {pipeline_mode = #tpu.pipeline_mode<synchronous>, transform_indices = @transform_4, window_bounds = array<i64: 1, 256>}, {pipeline_mode = #tpu.pipeline_mode<synchronous>, transform_indices = @transform_5, window_bounds = array<i64: 256, 128>}, {pipeline_mode = #tpu.pipeline_mode<synchronous>, transform_indices = @transform_6, window_bounds = array<i64: 1, 128>}, {transform_indices = @transform_7, window_bounds = array<i64: 2, 128>}]} {
    %c0_i32 = arith.constant 0 : i32
    %0 = arith.cmpi eq, %arg1, %c0_i32 : i32
    %c0_i32_0 = arith.constant 0 : i32
    %1 = arith.cmpi eq, %arg2, %c0_i32_0 : i32
    %2 = arith.andi %0, %1 : i1
    %3 = arith.extui %2 : i1 to i32
    %c0_i32_1 = arith.constant 0 : i32
    %4 = arith.cmpi ne, %3, %c0_i32_1 : i32
    scf.if %4 {
      %cst = arith.constant 0.000000e+00 : f32
      %21 = vector.broadcast %cst : f32 to vector<2x128xf32>
      %c0_12 = arith.constant 0 : index
      %c0_13 = arith.constant 0 : index
      %22 = vector.load %arg12[%c0_12, %c0_13] : memref<2x128xf32, #tpu.memory_space<vmem>>, vector<2x128xf32>
      tpu.vector_store %arg12[%c0_12, %c0_13], %21 {strides = array<i32>} : memref<2x128xf32, #tpu.memory_space<vmem>>, vector<2x128xf32>,
    } else {
    }
    %c0_i32_2 = arith.constant 0 : i32
    %5 = arith.cmpi eq, %arg2, %c0_i32_2 : i32
    %6 = arith.extui %5 : i1 to i32
    %c0_i32_3 = arith.constant 0 : i32
    %7 = arith.cmpi ne, %6, %c0_i32_3 : i32
    scf.if %7 {
      %cst = arith.constant 0.000000e+00 : f32
      %21 = vector.broadcast %cst : f32 to vector<2x128xf32>
      %c0_12 = arith.constant 0 : index
      %c0_13 = arith.constant 0 : index
      %22 = vector.load %arg11[%c0_12, %c0_13] : memref<2x128xf32, #tpu.memory_space<vmem>>, vector<2x128xf32>
      tpu.vector_store %arg11[%c0_12, %c0_13], %21 {strides = array<i32>} : memref<2x128xf32, #tpu.memory_space<vmem>>, vector<2x128xf32>,
    } else {
    }
    %c0 = arith.constant 0 : index
    %c0_4 = arith.constant 0 : index
    %8 = vector.load %arg11[%c0, %c0_4] : memref<2x128xf32, #tpu.memory_space<vmem>>, vector<2x128xf32>
    %c0_5 = arith.constant 0 : index
    %c0_6 = arith.constant 0 : index
    %9 = vector.load %arg3[%c0_5, %c0_6] : memref<2x128xbf16, #tpu.memory_space<vmem>>, vector<2x128xbf16>
    %10 = arith.extf %9 : vector<2x128xbf16> to vector<2x128xf32>
    %11 = arith.addf %8, %10 : vector<2x128xf32>
    %c0_7 = arith.constant 0 : index
    %c0_8 = arith.constant 0 : index
    %12 = vector.load %arg11[%c0_7, %c0_8] : memref<2x128xf32, #tpu.memory_space<vmem>>, vector<2x128xf32>
    tpu.vector_store %arg11[%c0_7, %c0_8], %11 {strides = array<i32>} : memref<2x128xf32, #tpu.memory_space<vmem>>, vector<2x128xf32>,
    %c1_i32 = arith.constant 1 : i32
    %13 = arith.cmpi eq, %arg2, %c1_i32 : i32
    %14 = arith.extui %13 : i1 to i32
    %c0_i32_9 = arith.constant 0 : i32
    %15 = arith.cmpi ne, %14, %c0_i32_9 : i32
    scf.if %15 {
      %c0_12 = arith.constant 0 : index
      %c0_13 = arith.constant 0 : index
      %21 = vector.load %arg11[%c0_12, %c0_13] : memref<2x128xf32, #tpu.memory_space<vmem>>, vector<2x128xf32>
      %cst = arith.constant dense<0.000000e+00> : vector<2xf32>
      %22 = vector.multi_reduction <add>, %21, %cst [1] : vector<2x128xf32> to vector<2xf32>
      %23 = vector.shape_cast %22 : vector<2xf32> to vector<2x1xf32>
      %24 = tpu.iota {dimensions = array<i32: 1>} : vector<1x128xi32>
      %c0_14 = arith.constant 0 : index
      %c0_15 = arith.constant 0 : index
      %25 = vector.load %arg12[%c0_14, %c0_15] : memref<2x128xf32, #tpu.memory_space<vmem>>, vector<2x128xf32>
      %26 = vector.broadcast %arg1 : i32 to vector<1x128xi32>
      %27 = arith.cmpi eq, %24, %26 : vector<1x128xi32>
      %cst_16 = arith.constant 0.000000e+00 : f32
      %28 = vector.shape_cast %27 : vector<1x128xi1> to vector<1x128xi1>
      %29 = vector.broadcast %28 : vector<1x128xi1> to vector<2x128xi1>
      %30 = vector.shape_cast %23 : vector<2x1xf32> to vector<2x1xf32>
      %31 = vector.broadcast %30 : vector<2x1xf32> to vector<2x128xf32>
      %32 = vector.broadcast %cst_16 : f32 to vector<2x128xf32>
      %33 = arith.select %29, %31, %32 : vector<2x128xi1>, vector<2x128xf32>
      %34 = arith.addf %25, %33 : vector<2x128xf32>
      %c0_17 = arith.constant 0 : index
      %c0_18 = arith.constant 0 : index
      %35 = vector.load %arg12[%c0_17, %c0_18] : memref<2x128xf32, #tpu.memory_space<vmem>>, vector<2x128xf32>
      tpu.vector_store %arg12[%c0_17, %c0_18], %34 {strides = array<i32>} : memref<2x128xf32, #tpu.memory_space<vmem>>, vector<2x128xf32>,
    } else {
    }
    %c2_i32 = arith.constant 2 : i32
    %16 = arith.cmpi eq, %arg1, %c2_i32 : i32
    %c1_i32_10 = arith.constant 1 : i32
    %17 = arith.cmpi eq, %arg2, %c1_i32_10 : i32
    %18 = arith.andi %16, %17 : i1
    %19 = arith.extui %18 : i1 to i32
    %c0_i32_11 = arith.constant 0 : i32
    %20 = arith.cmpi ne, %19, %c0_i32_11 : i32
    scf.if %20 {
      %c0_12 = arith.constant 0 : index
      %c0_13 = arith.constant 0 : index
      %21 = vector.load %arg12[%c0_12, %c0_13] : memref<2x128xf32, #tpu.memory_space<vmem>>, vector<2x128xf32>
      %c0_14 = arith.constant 0 : index
      %c0_15 = arith.constant 0 : index
      %22 = vector.load %arg4[%c0_14, %c0_15] : memref<128x1024xf32, #tpu.memory_space<vmem>>, vector<128x1024xf32>
      %cst = arith.constant dense<0.000000e+00> : vector<2x1024xf32>
      %23 = tpu.matmul %21, %22, %cst {dimension_numbers = #tpu.dot_dimension_numbers<[1], [0], [0], [1], [0, 0, 1, 1], [], []>} : vector<2x128xf32>, vector<128x1024xf32>, vector<2x1024xf32> -> vector<2x1024xf32>
      %c0_16 = arith.constant 0 : index
      %c0_17 = arith.constant 0 : index
      %24 = vector.load %arg5[%c0_16, %c0_17] : memref<1x1024xf32, #tpu.memory_space<vmem>>, vector<1x1024xf32>
      %25 = vector.broadcast %24 : vector<1x1024xf32> to vector<2x1024xf32>
      %26 = arith.addf %23, %25 : vector<2x1024xf32>
      %c0_18 = arith.constant 0 : index
      %c0_19 = arith.constant 0 : index
      %27 = vector.load %arg6[%c0_18, %c0_19] : memref<1024x256xf32, #tpu.memory_space<vmem>>, vector<1024x256xf32>
      %cst_20 = arith.constant dense<0.000000e+00> : vector<2x256xf32>
      %28 = tpu.matmul %26, %27, %cst_20 {dimension_numbers = #tpu.dot_dimension_numbers<[1], [0], [0], [1], [0, 0, 1, 1], [], []>} : vector<2x1024xf32>, vector<1024x256xf32>, vector<2x256xf32> -> vector<2x256xf32>
      %c0_21 = arith.constant 0 : index
      %c0_22 = arith.constant 0 : index
      %29 = vector.load %arg7[%c0_21, %c0_22] : memref<1x256xf32, #tpu.memory_space<vmem>>, vector<1x256xf32>
      %30 = vector.broadcast %29 : vector<1x256xf32> to vector<2x256xf32>
      %31 = arith.addf %28, %30 : vector<2x256xf32>
      %c0_23 = arith.constant 0 : index
      %c0_24 = arith.constant 0 : index
      %32 = vector.load %arg8[%c0_23, %c0_24] : memref<256x128xf32, #tpu.memory_space<vmem>>, vector<256x128xf32>
      %cst_25 = arith.constant dense<0.000000e+00> : vector<2x128xf32>
      %33 = tpu.matmul %31, %32, %cst_25 {dimension_numbers = #tpu.dot_dimension_numbers<[1], [0], [0], [1], [0, 0, 1, 1], [], []>} : vector<2x256xf32>, vector<256x128xf32>, vector<2x128xf32> -> vector<2x128xf32>
      %c0_26 = arith.constant 0 : index
      %c0_27 = arith.constant 0 : index
      %34 = vector.load %arg9[%c0_26, %c0_27] : memref<1x128xf32, #tpu.memory_space<vmem>>, vector<1x128xf32>
      %35 = vector.broadcast %34 : vector<1x128xf32> to vector<2x128xf32>
      %36 = arith.addf %33, %35 : vector<2x128xf32>
      %c0_28 = arith.constant 0 : index
      %c0_29 = arith.constant 0 : index
      %37 = vector.load %arg10[%c0_28, %c0_29] : memref<2x128xf32, #tpu.memory_space<vmem>>, vector<2x128xf32>
      tpu.vector_store %arg10[%c0_28, %c0_29], %36 {strides = array<i32>} : memref<2x128xf32, #tpu.memory_space<vmem>>, vector<2x128xf32>,
    } else {
    }
    return
  }
  func.func @transform_0(%arg0: i32, %arg1: i32, %arg2: i32) -> (i32, i32) {
    %c2_i32 = arith.constant 2 : i32
    %0 = arith.muli %arg1, %c2_i32 : i32
    %1 = arith.addi %0, %arg2 : i32
    %c0_i32 = arith.constant 0 : i32
    return %arg0, %1 : i32, i32
  }
  func.func @transform_1(%arg0: i32, %arg1: i32, %arg2: i32) -> (i32, i32) {
    %c0_i32 = arith.constant 0 : i32
    %c0_i32_0 = arith.constant 0 : i32
    %c0_i32_1 = arith.constant 0 : i32
    return %c0_i32, %c0_i32_0 : i32, i32
  }
  func.func @transform_2(%arg0: i32, %arg1: i32, %arg2: i32) -> (i32, i32) {
    %c0_i32 = arith.constant 0 : i32
    %c0_i32_0 = arith.constant 0 : i32
    %c0_i32_1 = arith.constant 0 : i32
    return %c0_i32, %c0_i32_0 : i32, i32
  }
  func.func @transform_3(%arg0: i32, %arg1: i32, %arg2: i32) -> (i32, i32) {
    %c0_i32 = arith.constant 0 : i32
    %c0_i32_0 = arith.constant 0 : i32
    %c0_i32_1 = arith.constant 0 : i32
    return %c0_i32, %c0_i32_0 : i32, i32
  }
  func.func @transform_4(%arg0: i32, %arg1: i32, %arg2: i32) -> (i32, i32) {
    %c0_i32 = arith.constant 0 : i32
    %c0_i32_0 = arith.constant 0 : i32
    %c0_i32_1 = arith.constant 0 : i32
    return %c0_i32, %c0_i32_0 : i32, i32
  }
  func.func @transform_5(%arg0: i32, %arg1: i32, %arg2: i32) -> (i32, i32) {
    %c0_i32 = arith.constant 0 : i32
    %c0_i32_0 = arith.constant 0 : i32
    %c0_i32_1 = arith.constant 0 : i32
    return %c0_i32, %c0_i32_0 : i32, i32
  }
  func.func @transform_6(%arg0: i32, %arg1: i32, %arg2: i32) -> (i32, i32) {
    %c0_i32 = arith.constant 0 : i32
    %c0_i32_0 = arith.constant 0 : i32
    %c0_i32_1 = arith.constant 0 : i32
    return %c0_i32, %c0_i32_0 : i32, i32
  }
  func.func @transform_7(%arg0: i32, %arg1: i32, %arg2: i32) -> (i32, i32) {
    %c0_i32 = arith.constant 0 : i32
    %c0_i32_0 = arith.constant 0 : i32
    return %arg0, %c0_i32 : i32, i32
  }
}

</mosaic_0001>

<llo_original>
// kernel: tpu_custom_call.1
$region0: #{tpu_custom_call.1}
  #allocation0 [shape = 'u32[]', space=smem, size = 0x4, offset = 0x4, fixed_abs, tag = 'smem constant byte address 0x4 - core index']
  #allocation1 [shape = 'u32[72,128]{1,0:T(1,128)}', space=vmem, size = 0x9000, scoped, tag = 'internal scratch']
  #allocation2 [shape = 'f32[2,128]{1,0:T(2,128)}', space=vmem, size = 0x400, scoped, tag = 'scratch operand']
  #allocation3 [shape = 'f32[2,128]{1,0:T(2,128)}', space=vmem, size = 0x400, scoped, tag = 'scratch operand']
  %s0 = inlined_call_operand.hbm [shape: bf16[2,768], index: 0, kind: input, shape index: {}]
  %s1 = inlined_call_operand.hbm [shape: f32[128,1024], index: 1, kind: input, shape index: {}]
  %s2 = inlined_call_operand.hbm [shape: f32[1,1024], index: 2, kind: input, shape index: {}]
  %s3 = inlined_call_operand.hbm [shape: f32[1024,256], index: 3, kind: input, shape index: {}]
  %s4 = inlined_call_operand.vmem [shape: f32[1,256], index: 4, kind: input, shape index: {}]
  %s5 = inlined_call_operand.hbm [shape: f32[256,128], index: 5, kind: input, shape index: {}]
  %s6 = inlined_call_operand.vmem [shape: f32[1,128], index: 6, kind: input, shape index: {}]
  %s7 = inlined_call_operand.hbm [shape: f32[2,128], index: 7, kind: output, shape index: {}]
  %s8 = sld [smem:[#allocation0]]
  $region97: #{tpu_custom_call.1} parent=0
    _
  %s10 = ssub.s32 1, %s8
  %s11 = scalar_select 0, %s10, %s8
  $region1: #{tpu_custom_call.1} parent=0
    #allocation4 [shape = 'u8[1024]{0}', space=vmem, size = 0x400, scoped, tag = 'input window, operand 0']
    #allocation5 [shape = 's32[2]{0}', space=sflag, size = 0x8, scoped, tag = 'scoped memory for tpu_custom_call.1']
    #allocation6 [shape = 's32[2]{0}', space=sflag, size = 0x8, scoped, tag = 'scoped memory for tpu_custom_call.1']
    #allocation7 [shape = 'u8[524288]{0}', space=vmem, size = 0x80000, scoped, tag = 'input window, operand 1, single buffered']
    #allocation8 [shape = 's32[1]{0}', space=sflag, size = 0x4, scoped, tag = 'scoped memory for tpu_custom_call.1']
    #allocation9 [shape = 'u8[4096]{0}', space=vmem, size = 0x1000, scoped, tag = 'input window, operand 2, single buffered']
    #allocation10 [shape = 'u8[1048576]{0}', space=vmem, size = 0x100000, scoped, tag = 'input window, operand 3, single buffered']
    #allocation11 [shape = 's32[1]{0}', space=sflag, size = 0x4, scoped, tag = 'scoped memory for tpu_custom_call.1']
    #allocation12 [shape = 'u8[131072]{0}', space=vmem, size = 0x20000, scoped, tag = 'input window, operand 5, single buffered']
    #allocation13 [shape = 'u8[1024]{0}', space=vmem, size = 0x400, scoped, tag = 'output window, operand 0, single buffered']
    %12 = vsyncpa [#allocation5], 0
    %s13 = scalar_lea.sflag [#allocation5], 1
    %14 = vsyncpa %s13, 0
    %15 = vsyncpa [#allocation8], 0
    %16 = vsyncpa [#allocation11], 0
    %17 = vsyncpa [#allocation6], 0
    loop: start=0, step=1, limit=8
    $region2: #{tpu_custom_call.1} parent=1 // loop_pre_header
      _
    $region3: #{tpu_custom_call.1} parent=1 // loop_header
      %s19 = sphi 0, %s23
      %p20 = scmp.ge.s32.totalorder %s19, 8
      %s26 = sphi 0, %s45
      %s27 = sphi 0, %s41
      %s28 = sphi 0, %s37
      %s29 = sphi 0, %s26
      %s30 = sphi 0, %s27
      %s31 = sphi 0, %s28
      %s32 = sphi 0, %s29
      %s33 = sphi 0, %s30
      %s34 = sphi 0, %s31
      %s54 = sphi 0, %s56
      %s57 = sphi 0, %s54
      %s58 = sphi 0, %s57
      %s74 = sphi 0, %s58
      %s78 = sphi 0, %s78
      %s80 = sphi 0, %s78
      %s81 = sphi 0, %s80
      %s95 = sphi 0, %s81
      %s99 = sphi 0, %s99
      %s101 = sphi 0, %s99
      %s102 = sphi 0, %s101
      %s116 = sphi 0, %s102
      %s120 = sphi 0, %s120
      %s122 = sphi 0, %s120
      %s123 = sphi 0, %s122
      %s137 = sphi 0, %s123
      %s141 = sphi 0, %s141
      %s143 = sphi 0, %s141
      %s144 = sphi 0, %s143
      %s158 = sphi 0, %s144
      %s162 = sphi 0, %s162
      %s164 = sphi 0, %s162
      %s165 = sphi 0, %s164
      %s179 = sphi 0, %s165
      %s183 = sphi 0, %s183
      %s185 = sphi 0, %s183
      %s186 = sphi 0, %s185
      %s200 = sphi 0, %s186
      %s206 = sphi 0, %s208
      %s209 = sphi 0, %s206
      %s210 = sphi 0, %s209
      %s226 = sphi 0, %s210
    $region4: #{tpu_custom_call.1} parent=1 // loop_header_branch
      %22 = sbr.rel (%p20) target = $region8
    $region5: #{tpu_custom_call.1} parent=1 // loop_body
      %s24 = ssub.s32 %s19, 1
      %s25 = ssub.s32 %s19, 2
      %s35 = sadd.s32 1, %s28
      %p36 = scmp.ge.s32.totalorder %s35, 2
      %s37 = scalar_select %p36, 0, %s35
      %s38 = sadd.s32 1, %s27
      %s39 = scalar_select %p36, %s38, %s27
      %p40 = scmp.ge.s32.totalorder %s39, 3
      %s41 = scalar_select %p40, 0, %s39
      %s42 = sadd.s32 1, %s26
      %s43 = scalar_select %p40, %s42, %s26
      %p44 = scmp.ge.s32.totalorder %s43, 1
      %s45 = scalar_select %p44, 0, %s43
      %s46 = smul.u32 %s27, 2
      %s47 = sadd.s32 %s46, %s28
      %s48 = smul.u32 %s41, 2
      %s49 = sadd.s32 %s48, %s37
      %s50 = ssub.s32 %s26, %s45
      %s51 = ssub.s32 %s47, %s49
      %s52 = sor.u32 %s50, %s51
      %p53 = scmp.eq.s32.totalorder %s52, 0
      %s55 = sadd.s32 %s54, 1
      %s56 = scalar_select %p53, %s54, %s55
      %p59 = pneg %p53
      %p60 = scmp.eq.s32.totalorder %s19, 5
      %p61 = por %p59, %p60
      %p62 = scmp.ne.s32.totalorder %s54, %s57
      %p63 = scmp.eq.s32.totalorder %s19, 0
      %p64 = por %p62, %p63
      %p65 = scmp.ne.s32.totalorder %s54, %s57
      %p66 = scmp.eq.s32.totalorder %s24, 5
      %p67 = por %p65, %p66
      %p68 = scmp.ne.s32.totalorder %s57, %s58
      %p69 = scmp.eq.s32.totalorder %s24, 0
      %p70 = por %p68, %p69
      %p71 = scmp.ne.s32.totalorder %s57, %s58
      %p72 = scmp.eq.s32.totalorder %s25, 5
      %p73 = por %p71, %p72
      %p75 = scmp.ne.s32.totalorder %s58, %s74
      %p76 = scmp.eq.s32.totalorder %s25, 0
      %p77 = por %p75, %p76
      %s79 = sadd.s32 %s78, 1
      %p82 = scmp.eq.s32.totalorder %s19, 5
      %p83 = scmp.ne.s32.totalorder %s78, %s80
      %p84 = scmp.eq.s32.totalorder %s19, 0
      %p85 = por %p83, %p84
      %p86 = scmp.ne.s32.totalorder %s78, %s80
      %p87 = scmp.eq.s32.totalorder %s24, 5
      %p88 = por %p86, %p87
      %p89 = scmp.ne.s32.totalorder %s80, %s81
      %p90 = scmp.eq.s32.totalorder %s24, 0
      %p91 = por %p89, %p90
      %p92 = scmp.ne.s32.totalorder %s80, %s81
      %p93 = scmp.eq.s32.totalorder %s25, 5
      %p94 = por %p92, %p93
      %p96 = scmp.ne.s32.totalorder %s81, %s95
      %p97 = scmp.eq.s32.totalorder %s25, 0
      %p98 = por %p96, %p97
      %s100 = sadd.s32 %s99, 1
      %p103 = scmp.eq.s32.totalorder %s19, 5
      %p104 = scmp.ne.s32.totalorder %s99, %s101
      %p105 = scmp.eq.s32.totalorder %s19, 0
      %p106 = por %p104, %p105
      %p107 = scmp.ne.s32.totalorder %s99, %s101
      %p108 = scmp.eq.s32.totalorder %s24, 5
      %p109 = por %p107, %p108
      %p110 = scmp.ne.s32.totalorder %s101, %s102
      %p111 = scmp.eq.s32.totalorder %s24, 0
      %p112 = por %p110, %p111
      %p113 = scmp.ne.s32.totalorder %s101, %s102
      %p114 = scmp.eq.s32.totalorder %s25, 5
      %p115 = por %p113, %p114
      %p117 = scmp.ne.s32.totalorder %s102, %s116
      %p118 = scmp.eq.s32.totalorder %s25, 0
      %p119 = por %p117, %p118
      %s121 = sadd.s32 %s120, 1
      %p124 = scmp.eq.s32.totalorder %s19, 5
      %p125 = scmp.ne.s32.totalorder %s120, %s122
      %p126 = scmp.eq.s32.totalorder %s19, 0
      %p127 = por %p125, %p126
      %p128 = scmp.ne.s32.totalorder %s120, %s122
      %p129 = scmp.eq.s32.totalorder %s24, 5
      %p130 = por %p128, %p129
      %p131 = scmp.ne.s32.totalorder %s122, %s123
      %p132 = scmp.eq.s32.totalorder %s24, 0
      %p133 = por %p131, %p132
      %p134 = scmp.ne.s32.totalorder %s122, %s123
      %p135 = scmp.eq.s32.totalorder %s25, 5
      %p136 = por %p134, %p135
      %p138 = scmp.ne.s32.totalorder %s123, %s137
      %p139 = scmp.eq.s32.totalorder %s25, 0
      %p140 = por %p138, %p139
      %s142 = sadd.s32 %s141, 1
      %p145 = scmp.eq.s32.totalorder %s19, 5
      %p146 = scmp.ne.s32.totalorder %s141, %s143
      %p147 = scmp.eq.s32.totalorder %s19, 0
      %p148 = por %p146, %p147
      %p149 = scmp.ne.s32.totalorder %s141, %s143
      %p150 = scmp.eq.s32.totalorder %s24, 5
      %p151 = por %p149, %p150
      %p152 = scmp.ne.s32.totalorder %s143, %s144
      %p153 = scmp.eq.s32.totalorder %s24, 0
      %p154 = por %p152, %p153
      %p155 = scmp.ne.s32.totalorder %s143, %s144
      %p156 = scmp.eq.s32.totalorder %s25, 5
      %p157 = por %p155, %p156
      %p159 = scmp.ne.s32.totalorder %s144, %s158
      %p160 = scmp.eq.s32.totalorder %s25, 0
      %p161 = por %p159, %p160
      %s163 = sadd.s32 %s162, 1
      %p166 = scmp.eq.s32.totalorder %s19, 5
      %p167 = scmp.ne.s32.totalorder %s162, %s164
      %p168 = scmp.eq.s32.totalorder %s19, 0
      %p169 = por %p167, %p168
      %p170 = scmp.ne.s32.totalorder %s162, %s164
      %p171 = scmp.eq.s32.totalorder %s24, 5
      %p172 = por %p170, %p171
      %p173 = scmp.ne.s32.totalorder %s164, %s165
      %p174 = scmp.eq.s32.totalorder %s24, 0
      %p175 = por %p173, %p174
      %p176 = scmp.ne.s32.totalorder %s164, %s165
      %p177 = scmp.eq.s32.totalorder %s25, 5
      %p178 = por %p176, %p177
      %p180 = scmp.ne.s32.totalorder %s165, %s179
      %p181 = scmp.eq.s32.totalorder %s25, 0
      %p182 = por %p180, %p181
      %s184 = sadd.s32 %s183, 1
      %p187 = scmp.eq.s32.totalorder %s19, 5
      %p188 = scmp.ne.s32.totalorder %s183, %s185
      %p189 = scmp.eq.s32.totalorder %s19, 0
      %p190 = por %p188, %p189
      %p191 = scmp.ne.s32.totalorder %s183, %s185
      %p192 = scmp.eq.s32.totalorder %s24, 5
      %p193 = por %p191, %p192
      %p194 = scmp.ne.s32.totalorder %s185, %s186
      %p195 = scmp.eq.s32.totalorder %s24, 0
      %p196 = por %p194, %p195
      %p197 = scmp.ne.s32.totalorder %s185, %s186
      %p198 = scmp.eq.s32.totalorder %s25, 5
      %p199 = por %p197, %p198
      %p201 = scmp.ne.s32.totalorder %s186, %s200
      %p202 = scmp.eq.s32.totalorder %s25, 0
      %p203 = por %p201, %p202
      %s204 = ssub.s32 %s26, %s45
      %p205 = scmp.eq.s32.totalorder %s204, 0
      %s207 = sadd.s32 %s206, 1
      %s208 = scalar_select %p205, %s206, %s207
      %p211 = pneg %p205
      %p212 = scmp.eq.s32.totalorder %s19, 5
      %p213 = por %p211, %p212
      %p214 = scmp.ne.s32.totalorder %s206, %s209
      %p215 = scmp.eq.s32.totalorder %s19, 0
      %p216 = por %p214, %p215
      %p217 = scmp.ne.s32.totalorder %s206, %s209
      %p218 = scmp.eq.s32.totalorder %s24, 5
      %p219 = por %p217, %p218
      %p220 = scmp.ne.s32.totalorder %s209, %s210
      %p221 = scmp.eq.s32.totalorder %s24, 0
      %p222 = por %p220, %p221
      %p223 = scmp.ne.s32.totalorder %s209, %s210
      %p224 = scmp.eq.s32.totalorder %s25, 5
      %p225 = por %p223, %p224
      %p227 = scmp.ne.s32.totalorder %s210, %s226
      %p228 = scmp.eq.s32.totalorder %s25, 0
      %p229 = por %p227, %p228
      %p230 = scmp.le.s32.totalorder 1, %s19
      %p231 = scmp.lt.s32.totalorder %s19, 7
      %p232 = pnand %p230, %p231
      %p233 = pneg %p232
      // Predicated region
      $region9: #{tpu_custom_call.1} parent=5 // pred_check
        _
      $region10: #{tpu_custom_call.1} parent=5 // pred_check_branch
        %235 = sbr.rel (%p232) target = $region12
      $region11: #{tpu_custom_call.1} parent=5 // pred_region
        %s236 = ssub.s32 %s19, 1
        // Predicated region
        $region13: #{tpu_custom_call.1} parent=11 // pred_check
          %p237 = pneg %p91
        $region14: #{tpu_custom_call.1} parent=11 // pred_check_branch
          %239 = sbr.rel (%p237) target = $region16
        $region15: #{tpu_custom_call.1} parent=11 // pred_region
          %241 = vsyncadd [#allocation8], 0
          %s242 = sshll.u32 %s1, 4
          %s243 = int_to_ptr.hbm [resolvable:$true] %s242
          %s244 = sshll.u32 [#allocation7], 4
          %s245 = int_to_ptr.vmem [resolvable:$true] %s244
          %250 = dma.hbm_to_vmem [thread:$0]  %s243, 16384, %s245, [#allocation8], 1024, 1024, 64
        $region16: #{tpu_custom_call.1} parent=11 // pred_fallthru
          _
        // Predicated region
        $region17: #{tpu_custom_call.1} parent=11 // pred_check
          %p251 = pneg %p112
        $region18: #{tpu_custom_call.1} parent=11 // pred_check_branch
          %253 = sbr.rel (%p251) target = $region20
        $region19: #{tpu_custom_call.1} parent=11 // pred_region
          %255 = vsyncadd [#allocation8], 0
          %s257 = sshll.u32 %s2, 4
          %s258 = int_to_ptr.hbm [resolvable:$true] %s257
          %s259 = sshll.u32 [#allocation9], 4
          %s260 = int_to_ptr.vmem [resolvable:$true] %s259
          %262 = dma.hbm_to_vmem [thread:$0]  %s258, 128, %s260, [#allocation8]
        $region20: #{tpu_custom_call.1} parent=11 // pred_fallthru
          _
        // Predicated region
        $region21: #{tpu_custom_call.1} parent=11 // pred_check
          %p263 = pneg %p133
        $region22: #{tpu_custom_call.1} parent=11 // pred_check_branch
          %265 = sbr.rel (%p263) target = $region24
        $region23: #{tpu_custom_call.1} parent=11 // pred_region
          %267 = vsyncadd [#allocation11], 0
          %s268 = sshll.u32 %s3, 4
          %s269 = int_to_ptr.hbm [resolvable:$true] %s268
          %s270 = sshll.u32 [#allocation10], 4
          %s271 = int_to_ptr.vmem [resolvable:$true] %s270
          %276 = dma.hbm_to_vmem [thread:$0]  %s269, 32768, %s271, [#allocation11], 256, 256, 16
        $region24: #{tpu_custom_call.1} parent=11 // pred_fallthru
          _
        // Predicated region
        $region25: #{tpu_custom_call.1} parent=11 // pred_check
          %p277 = pneg %p154
        $region26: #{tpu_custom_call.1} parent=11 // pred_check_branch
          %279 = sbr.rel (%p277) target = $region28
        $region27: #{tpu_custom_call.1} parent=11 // pred_region
          _
        $region28: #{tpu_custom_call.1} parent=11 // pred_fallthru
          _
        // Predicated region
        $region29: #{tpu_custom_call.1} parent=11 // pred_check
          %p280 = pneg %p175
        $region30: #{tpu_custom_call.1} parent=11 // pred_check_branch
          %282 = sbr.rel (%p280) target = $region32
        $region31: #{tpu_custom_call.1} parent=11 // pred_region
          %284 = vsyncadd [#allocation11], 0
          %s285 = sshll.u32 %s5, 4
          %s286 = int_to_ptr.hbm [resolvable:$true] %s285
          %s287 = sshll.u32 [#allocation12], 4
          %s288 = int_to_ptr.vmem [resolvable:$true] %s287
          %293 = dma.hbm_to_vmem [thread:$0]  %s286, 4096, %s288, [#allocation11], 128, 128, 8
        $region32: #{tpu_custom_call.1} parent=11 // pred_fallthru
          _
        // Predicated region
        $region33: #{tpu_custom_call.1} parent=11 // pred_check
          %p294 = pneg %p196
        $region34: #{tpu_custom_call.1} parent=11 // pred_check_branch
          %296 = sbr.rel (%p294) target = $region36
        $region35: #{tpu_custom_call.1} parent=11 // pred_region
          _
        $region36: #{tpu_custom_call.1} parent=11 // pred_fallthru
          _
      $region12: #{tpu_custom_call.1} parent=5 // pred_fallthru
        _
      %p297 = scmp.lt.s32.totalorder %s19, 6
      // Predicated region
      $region37: #{tpu_custom_call.1} parent=5 // pred_check
        %p298 = pneg %p297
      $region38: #{tpu_custom_call.1} parent=5 // pred_check_branch
        %300 = sbr.rel (%p298) target = $region40
      $region39: #{tpu_custom_call.1} parent=5 // pred_region
        // Predicated region
        $region41: #{tpu_custom_call.1} parent=39 // pred_check
          %p301 = pneg %p64
        $region42: #{tpu_custom_call.1} parent=39 // pred_check_branch
          %303 = sbr.rel (%p301) target = $region44
        $region43: #{tpu_custom_call.1} parent=39 // pred_region
          %s304 = sand.u32 %s54, 1
          %s305 = scalar_lea.sflag [#allocation5], %s304
          %s306 = sand.u32 %s54, 1
          %s307 = scalar_lea.vmem [#allocation4], %s306
          %s308 = smul.u32 %s27, 2
          %s309 = sadd.s32 %s308, %s28
          %311 = vsyncadd %s305, 0
          %s312 = smul.addr %s26, 6
          %s313 = sadd.s32 %s309, %s312
          %s314 = scalar_lea.hbm %s0, %s313
          %s316 = sshll.u32 %s314, 4
          %s317 = int_to_ptr.hbm [resolvable:$true] %s316
          %s318 = sshll.u32 %s307, 4
          %s319 = int_to_ptr.vmem [resolvable:$true] %s318
          %321 = dma.hbm_to_vmem [thread:$0]  %s317, 16, %s319, %s305
        $region44: #{tpu_custom_call.1} parent=39 // pred_fallthru
          _
      $region40: #{tpu_custom_call.1} parent=5 // pred_fallthru
        _
      %p322 = scmp.le.s32.totalorder 1, %s19
      %p323 = scmp.lt.s32.totalorder %s19, 7
      %p324 = pnand %p322, %p323
      %p325 = pneg %p324
      // Predicated region
      $region45: #{tpu_custom_call.1} parent=5 // pred_check
        _
      $region46: #{tpu_custom_call.1} parent=5 // pred_check_branch
        %327 = sbr.rel (%p324) target = $region48
      $region47: #{tpu_custom_call.1} parent=5 // pred_region
        %s328 = ssub.s32 %s19, 1
        %s329 = sand.u32 %s57, 1
        %s330 = scalar_lea.sflag [#allocation5], %s329
        %s331 = sand.u32 %s57, 1
        %s332 = scalar_lea.vmem [#allocation4], %s331
        // Predicated region
        $region49: #{tpu_custom_call.1} parent=47 // pred_check
          %p333 = pneg %p70
        $region50: #{tpu_custom_call.1} parent=47 // pred_check_branch
          %335 = sbr.rel (%p333) target = $region52
        $region51: #{tpu_custom_call.1} parent=47 // pred_region
          %337 = dma.done %s330, 16
        $region52: #{tpu_custom_call.1} parent=47 // pred_fallthru
          _
        // Predicated region
        $region53: #{tpu_custom_call.1} parent=47 // pred_check
          %p338 = pneg %p91
        $region54: #{tpu_custom_call.1} parent=47 // pred_check_branch
          %340 = sbr.rel (%p338) target = $region56
        $region55: #{tpu_custom_call.1} parent=47 // pred_region
          %342 = dma.done [#allocation8], 16384
        $region56: #{tpu_custom_call.1} parent=47 // pred_fallthru
          _
        // Predicated region
        $region57: #{tpu_custom_call.1} parent=47 // pred_check
          %p343 = pneg %p112
        $region58: #{tpu_custom_call.1} parent=47 // pred_check_branch
          %345 = sbr.rel (%p343) target = $region60
        $region59: #{tpu_custom_call.1} parent=47 // pred_region
          %347 = dma.done [#allocation8], 128
        $region60: #{tpu_custom_call.1} parent=47 // pred_fallthru
          _
        // Predicated region
        $region61: #{tpu_custom_call.1} parent=47 // pred_check
          %p348 = pneg %p133
        $region62: #{tpu_custom_call.1} parent=47 // pred_check_branch
          %350 = sbr.rel (%p348) target = $region64
        $region63: #{tpu_custom_call.1} parent=47 // pred_region
          %352 = dma.done [#allocation11], 32768
        $region64: #{tpu_custom_call.1} parent=47 // pred_fallthru
          _
        // Predicated region
        $region65: #{tpu_custom_call.1} parent=47 // pred_check
          %p353 = pneg %p175
        $region66: #{tpu_custom_call.1} parent=47 // pred_check_branch
          %355 = sbr.rel (%p353) target = $region68
        $region67: #{tpu_custom_call.1} parent=47 // pred_region
          %357 = dma.done [#allocation11], 4096
        $region68: #{tpu_custom_call.1} parent=47 // pred_fallthru
          _
        %s358 = sand.u32 %s57, 1
        %s359 = scalar_lea.sflag [#allocation5], %s358
        %s360 = sand.u32 %s57, 1
        %s361 = scalar_lea.vmem [#allocation4], %s360
        %p362 = pneg %p70
        %p363 = pneg %p67
        %p364 = pneg %p91
        %p365 = pneg %p88
        %p366 = pneg %p112
        %p367 = pneg %p109
        %p368 = pneg %p133
        %p369 = pneg %p130
        %p370 = pneg %p154
        %p371 = pneg %p151
        %p372 = pneg %p175
        %p373 = pneg %p172
        %p374 = pneg %p196
        %p375 = pneg %p193
        %p376 = pneg %p222
        %p377 = pneg %p219
        %s378 = smul.u32 %s30, 2
        %s379 = sadd.s32 %s378, %s31
        %p380 = scmp.eq.s32.totalorder %s30, 0
        %p381 = scmp.eq.s32.totalorder %s31, 0
        %p382 = pnand %p380, %p381
        %p383 = pneg %p382
        // Predicated region
        $region69: #{tpu_custom_call.1} parent=47 // pred_check
          _
        $region70: #{tpu_custom_call.1} parent=47 // pred_check_branch
          %385 = sbr.rel (%p382) target = $region72
        $region71: #{tpu_custom_call.1} parent=47 // pred_region
          %386 = vst [vmem:[#allocation3] sm:$0x3] 0.0
        $region72: #{tpu_custom_call.1} parent=47 // pred_fallthru
          _
        // Predicated region
        $region73: #{tpu_custom_call.1} parent=47 // pred_check
          %p387 = pneg %p381
        $region74: #{tpu_custom_call.1} parent=47 // pred_check_branch
          %389 = sbr.rel (%p387) target = $region76
        $region75: #{tpu_custom_call.1} parent=47 // pred_region
          %390 = vst [vmem:[#allocation2] sm:$0x3] 0.0
        $region76: #{tpu_custom_call.1} parent=47 // pred_fallthru
          _
        %v391 = vld [vmem:[#allocation2] sm:$0x3]
        %v392 = vld [vmem:[%s332] sm:$0x1]
        %v393 = vunpack.c.l.bf16 %v392
        %v394 = vadd.f32 %v391, %v393
        %395 = vst [vmem:[#allocation2] sm:$0x3] %v394
        %p396 = scmp.eq.s32.totalorder %s31, 1
        // Predicated region
        $region77: #{tpu_custom_call.1} parent=47 // pred_check
          %p397 = pneg %p396
        $region78: #{tpu_custom_call.1} parent=47 // pred_check_branch
          %399 = sbr.rel (%p397) target = $region80
        $region79: #{tpu_custom_call.1} parent=47 // pred_region
          %v400 = vld [vmem:[#allocation2] sm:$0x3]
          %vm401 = vcmask 1041408
          %v402 = vsel %vm401, %v400, 0.0
          %403 = vadd.xlane.f32.xlu0 %v402
          %v404 = vpop.xlane.xlu0 %403
          %v405 = vlaneseq
          %v406 = vand.u32 %v405, 127
          %v407 = vld [vmem:[#allocation3] sm:$0x3]
          %v408 = vstv %s30
          %vm409 = vcmp.eq.s32.totalorder %v406, %v408
          %v410 = vsel %vm409, 1, 0
          %vm411 = vcmp.eq.s32.totalorder %v410, 1
          %v412 = vsel %vm411, %v404, 0.0
          %v413 = vadd.f32 %v407, %v412
          %414 = vst [vmem:[#allocation3] sm:$0x3] %v413
        $region80: #{tpu_custom_call.1} parent=47 // pred_fallthru
          _
        %p415 = scmp.eq.s32.totalorder %s30, 2
        %p416 = pnand %p415, %p396
        %p417 = pneg %p416
        // Predicated region
        $region81: #{tpu_custom_call.1} parent=47 // pred_check
          _
        $region82: #{tpu_custom_call.1} parent=47 // pred_check_branch
          %419 = sbr.rel (%p416) target = $region84
        $region83: #{tpu_custom_call.1} parent=47 // pred_region
          %v420 = vld [vmem:[#allocation3] sm:$0x3]
          %v421 = vld [vmem:[#allocation7] sm:$0xff]
          %v422 = vld [vmem:[#allocation7 + $0x8] sm:$0xff]
          %v423 = vld [vmem:[#allocation7 + $0x10] sm:$0xff]
          %v424 = vld [vmem:[#allocation7 + $0x18] sm:$0xff]
          %v425 = vld [vmem:[#allocation7 + $0x20] sm:$0xff]
          %v426 = vld [vmem:[#allocation7 + $0x28] sm:$0xff]
          %v427 = vld [vmem:[#allocation7 + $0x30] sm:$0xff]
          %v428 = vld [vmem:[#allocation7 + $0x38] sm:$0xff]
          %v429 = vld [vmem:[#allocation7 + $0x40] sm:$0xff]
          %v430 = vld [vmem:[#allocation7 + $0x48] sm:$0xff]
          %v431 = vld [vmem:[#allocation7 + $0x50] sm:$0xff]
          %v432 = vld [vmem:[#allocation7 + $0x58] sm:$0xff]
          %v433 = vld [vmem:[#allocation7 + $0x60] sm:$0xff]
          %v434 = vld [vmem:[#allocation7 + $0x68] sm:$0xff]
          %v435 = vld [vmem:[#allocation7 + $0x70] sm:$0xff]
          %v436 = vld [vmem:[#allocation7 + $0x78] sm:$0xff]
          %v437 = vld [vmem:[#allocation7 + $0x80] sm:$0xff]
          %v438 = vld [vmem:[#allocation7 + $0x88] sm:$0xff]
          %v439 = vld [vmem:[#allocation7 + $0x90] sm:$0xff]
          %v440 = vld [vmem:[#allocation7 + $0x98] sm:$0xff]
          %v441 = vld [vmem:[#allocation7 + $0xa0] sm:$0xff]
          %v442 = vld [vmem:[#allocation7 + $0xa8] sm:$0xff]
          %v443 = vld [vmem:[#allocation7 + $0xb0] sm:$0xff]
          %v444 = vld [vmem:[#allocation7 + $0xb8] sm:$0xff]
          %v445 = vld [vmem:[#allocation7 + $0xc0] sm:$0xff]
          %v446 = vld [vmem:[#allocation7 + $0xc8] sm:$0xff]
          %v447 = vld [vmem:[#allocation7 + $0xd0] sm:$0xff]
          %v448 = vld [vmem:[#allocation7 + $0xd8] sm:$0xff]
          %v449 = vld [vmem:[#allocation7 + $0xe0] sm:$0xff]
          %v450 = vld [vmem:[#allocation7 + $0xe8] sm:$0xff]
          %v451 = vld [vmem:[#allocation7 + $0xf0] sm:$0xff]
          %v452 = vld [vmem:[#allocation7 + $0xf8] sm:$0xff]
          %v453 = vld [vmem:[#allocation7 + $0x100] sm:$0xff]
          %v454 = vld [vmem:[#allocation7 + $0x108] sm:$0xff]
          %v455 = vld [vmem:[#allocation7 + $0x110] sm:$0xff]
          %v456 = vld [vmem:[#allocation7 + $0x118] sm:$0xff]
          %v457 = vld [vmem:[#allocation7 + $0x120] sm:$0xff]
          %v458 = vld [vmem:[#allocation7 + $0x128] sm:$0xff]
          %v459 = vld [vmem:[#allocation7 + $0x130] sm:$0xff]
          %v460 = vld [vmem:[#allocation7 + $0x138] sm:$0xff]
          %v461 = vld [vmem:[#allocation7 + $0x140] sm:$0xff]
          %v462 = vld [vmem:[#allocation7 + $0x148] sm:$0xff]
          %v463 = vld [vmem:[#allocation7 + $0x150] sm:$0xff]
          %v464 = vld [vmem:[#allocation7 + $0x158] sm:$0xff]
          %v465 = vld [vmem:[#allocation7 + $0x160] sm:$0xff]
          %v466 = vld [vmem:[#allocation7 + $0x168] sm:$0xff]
          %v467 = vld [vmem:[#allocation7 + $0x170] sm:$0xff]
          %v468 = vld [vmem:[#allocation7 + $0x178] sm:$0xff]
          %v469 = vld [vmem:[#allocation7 + $0x180] sm:$0xff]
          %v470 = vld [vmem:[#allocation7 + $0x188] sm:$0xff]
          %v471 = vld [vmem:[#allocation7 + $0x190] sm:$0xff]
          %v472 = vld [vmem:[#allocation7 + $0x198] sm:$0xff]
          %v473 = vld [vmem:[#allocation7 + $0x1a0] sm:$0xff]
          %v474 = vld [vmem:[#allocation7 + $0x1a8] sm:$0xff]
          %v475 = vld [vmem:[#allocation7 + $0x1b0] sm:$0xff]
          %v476 = vld [vmem:[#allocation7 + $0x1b8] sm:$0xff]
          %v477 = vld [vmem:[#allocation7 + $0x1c0] sm:$0xff]
          %v478 = vld [vmem:[#allocation7 + $0x1c8] sm:$0xff]
          %v479 = vld [vmem:[#allocation7 + $0x1d0] sm:$0xff]
          %v480 = vld [vmem:[#allocation7 + $0x1d8] sm:$0xff]
          %v481 = vld [vmem:[#allocation7 + $0x1e0] sm:$0xff]
          %v482 = vld [vmem:[#allocation7 + $0x1e8] sm:$0xff]
          %v483 = vld [vmem:[#allocation7 + $0x1f0] sm:$0xff]
          %v484 = vld [vmem:[#allocation7 + $0x1f8] sm:$0xff]
          %v485 = vld [vmem:[#allocation7 + $0x200] sm:$0xff]
          %v486 = vld [vmem:[#allocation7 + $0x208] sm:$0xff]
          %v487 = vld [vmem:[#allocation7 + $0x210] sm:$0xff]
          %v488 = vld [vmem:[#allocation7 + $0x218] sm:$0xff]
          %v489 = vld [vmem:[#allocation7 + $0x220] sm:$0xff]
          %v490 = vld [vmem:[#allocation7 + $0x228] sm:$0xff]
          %v491 = vld [vmem:[#allocation7 + $0x230] sm:$0xff]
          %v492 = vld [vmem:[#allocation7 + $0x238] sm:$0xff]
          %v493 = vld [vmem:[#allocation7 + $0x240] sm:$0xff]
          %v494 = vld [vmem:[#allocation7 + $0x248] sm:$0xff]
          %v495 = vld [vmem:[#allocation7 + $0x250] sm:$0xff]
          %v496 = vld [vmem:[#allocation7 + $0x258] sm:$0xff]
          %v497 = vld [vmem:[#allocation7 + $0x260] sm:$0xff]
          %v498 = vld [vmem:[#allocation7 + $0x268] sm:$0xff]
          %v499 = vld [vmem:[#allocation7 + $0x270] sm:$0xff]
          %v500 = vld [vmem:[#allocation7 + $0x278] sm:$0xff]
          %v501 = vld [vmem:[#allocation7 + $0x280] sm:$0xff]
          %v502 = vld [vmem:[#allocation7 + $0x288] sm:$0xff]
          %v503 = vld [vmem:[#allocation7 + $0x290] sm:$0xff]
          %v504 = vld [vmem:[#allocation7 + $0x298] sm:$0xff]
          %v505 = vld [vmem:[#allocation7 + $0x2a0] sm:$0xff]
          %v506 = vld [vmem:[#allocation7 + $0x2a8] sm:$0xff]
          %v507 = vld [vmem:[#allocation7 + $0x2b0] sm:$0xff]
          %v508 = vld [vmem:[#allocation7 + $0x2b8] sm:$0xff]
          %v509 = vld [vmem:[#allocation7 + $0x2c0] sm:$0xff]
          %v510 = vld [vmem:[#allocation7 + $0x2c8] sm:$0xff]
          %v511 = vld [vmem:[#allocation7 + $0x2d0] sm:$0xff]
          %v512 = vld [vmem:[#allocation7 + $0x2d8] sm:$0xff]
          %v513 = vld [vmem:[#allocation7 + $0x2e0] sm:$0xff]
          %v514 = vld [vmem:[#allocation7 + $0x2e8] sm:$0xff]
          %v515 = vld [vmem:[#allocation7 + $0x2f0] sm:$0xff]
          %v516 = vld [vmem:[#allocation7 + $0x2f8] sm:$0xff]
          %v517 = vld [vmem:[#allocation7 + $0x300] sm:$0xff]
          %v518 = vld [vmem:[#allocation7 + $0x308] sm:$0xff]
          %v519 = vld [vmem:[#allocation7 + $0x310] sm:$0xff]
          %v520 = vld [vmem:[#allocation7 + $0x318] sm:$0xff]
          %v521 = vld [vmem:[#allocation7 + $0x320] sm:$0xff]
          %v522 = vld [vmem:[#allocation7 + $0x328] sm:$0xff]
          %v523 = vld [vmem:[#allocation7 + $0x330] sm:$0xff]
          %v524 = vld [vmem:[#allocation7 + $0x338] sm:$0xff]
          %v525 = vld [vmem:[#allocation7 + $0x340] sm:$0xff]
          %v526 = vld [vmem:[#allocation7 + $0x348] sm:$0xff]
          %v527 = vld [vmem:[#allocation7 + $0x350] sm:$0xff]
          %v528 = vld [vmem:[#allocation7 + $0x358] sm:$0xff]
          %v529 = vld [vmem:[#allocation7 + $0x360] sm:$0xff]
          %v530 = vld [vmem:[#allocation7 + $0x368] sm:$0xff]
          %v531 = vld [vmem:[#allocation7 + $0x370] sm:$0xff]
          %v532 = vld [vmem:[#allocation7 + $0x378] sm:$0xff]
          %v533 = vld [vmem:[#allocation7 + $0x380] sm:$0xff]
          %v534 = vld [vmem:[#allocation7 + $0x388] sm:$0xff]
          %v535 = vld [vmem:[#allocation7 + $0x390] sm:$0xff]
          %v536 = vld [vmem:[#allocation7 + $0x398] sm:$0xff]
          %v537 = vld [vmem:[#allocation7 + $0x3a0] sm:$0xff]
          %v538 = vld [vmem:[#allocation7 + $0x3a8] sm:$0xff]
          %v539 = vld [vmem:[#allocation7 + $0x3b0] sm:$0xff]
          %v540 = vld [vmem:[#allocation7 + $0x3b8] sm:$0xff]
          %v541 = vld [vmem:[#allocation7 + $0x3c0] sm:$0xff]
          %v542 = vld [vmem:[#allocation7 + $0x3c8] sm:$0xff]
          %v543 = vld [vmem:[#allocation7 + $0x3d0] sm:$0xff]
          %v544 = vld [vmem:[#allocation7 + $0x3d8] sm:$0xff]
          %v545 = vld [vmem:[#allocation7 + $0x3e0] sm:$0xff]
          %v546 = vld [vmem:[#allocation7 + $0x3e8] sm:$0xff]
          %v547 = vld [vmem:[#allocation7 + $0x3f0] sm:$0xff]
          %v548 = vld [vmem:[#allocation7 + $0x3f8] sm:$0xff]
          %v549 = vld [vmem:[#allocation9] sm:$0xff]
          %v551 = vperm.slane %v549, 0
          %v552 = vperm.slane %v549, 1
          %v553 = vperm.slane %v549, 2
          %v554 = vperm.slane %v549, 3
          %v555 = vperm.slane %v549, 4
          %v556 = vperm.slane %v549, 5
          %v557 = vperm.slane %v549, 6
          %v558 = vperm.slane %v549, 7
          %567 = vmatpush.msra.mxu0 %v541
          %568 = vmatpush.msra.mxu0 %v533
          %569 = vmatpush.msra.mxu0 %v525
          %570 = vmatpush.msra.mxu0 %v517
          %571 = vmatpush.msra.mxu0 %v509
          %572 = vmatpush.msra.mxu0 %v501
          %573 = vmatpush.msra.mxu0 %v493
          %574 = vmatpush.msra.mxu0 %v485
          %575 = vmatpush.msra.mxu0 %v477
          %576 = vmatpush.msra.mxu0 %v469
          %577 = vmatpush.msra.mxu0 %v461
          %578 = vmatpush.msra.mxu0 %v453
          %579 = vmatpush.msra.mxu0 %v445
          %580 = vmatpush.msra.mxu0 %v437
          %581 = vmatpush.msra.mxu0 %v429
          %582 = vmatpush.msra.mxu0 %v421
          %583 = vmatmul.f32.gmra.mxu0 %v420
          %v584 = vpop.f32.mrf.mxu0
          %v585 = vadd.f32 %v551, %v584
          %586 = vdwg.mxu0
          %587 = vmatpush.msra.mxu0 %v542
          %588 = vmatpush.msra.mxu0 %v534
          %589 = vmatpush.msra.mxu0 %v526
          %590 = vmatpush.msra.mxu0 %v518
          %591 = vmatpush.msra.mxu0 %v510
          %592 = vmatpush.msra.mxu0 %v502
          %593 = vmatpush.msra.mxu0 %v494
          %594 = vmatpush.msra.mxu0 %v486
          %595 = vmatpush.msra.mxu0 %v478
          %596 = vmatpush.msra.mxu0 %v470
          %597 = vmatpush.msra.mxu0 %v462
          %598 = vmatpush.msra.mxu0 %v454
          %599 = vmatpush.msra.mxu0 %v446
          %600 = vmatpush.msra.mxu0 %v438
          %601 = vmatpush.msra.mxu0 %v430
          %602 = vmatpush.msra.mxu0 %v422
          %603 = vmatmul.f32.gmra.mxu0 %v420
          %v604 = vpop.f32.mrf.mxu0
          %v605 = vadd.f32 %v552, %v604
          %606 = vdwg.mxu0
          %607 = vmatpush.msra.mxu0 %v543
          %608 = vmatpush.msra.mxu0 %v535
          %609 = vmatpush.msra.mxu0 %v527
          %610 = vmatpush.msra.mxu0 %v519
          %611 = vmatpush.msra.mxu0 %v511
          %612 = vmatpush.msra.mxu0 %v503
          %613 = vmatpush.msra.mxu0 %v495
          %614 = vmatpush.msra.mxu0 %v487
          %615 = vmatpush.msra.mxu0 %v479
          %616 = vmatpush.msra.mxu0 %v471
          %617 = vmatpush.msra.mxu0 %v463
          %618 = vmatpush.msra.mxu0 %v455
          %619 = vmatpush.msra.mxu0 %v447
          %620 = vmatpush.msra.mxu0 %v439
          %621 = vmatpush.msra.mxu0 %v431
          %622 = vmatpush.msra.mxu0 %v423
          %623 = vmatmul.f32.gmra.mxu0 %v420
          %v624 = vpop.f32.mrf.mxu0
          %v625 = vadd.f32 %v553, %v624
          %626 = vdwg.mxu0
          %627 = vmatpush.msra.mxu0 %v544
          %628 = vmatpush.msra.mxu0 %v536
          %629 = vmatpush.msra.mxu0 %v528
          %630 = vmatpush.msra.mxu0 %v520
          %631 = vmatpush.msra.mxu0 %v512
          %632 = vmatpush.msra.mxu0 %v504
          %633 = vmatpush.msra.mxu0 %v496
          %634 = vmatpush.msra.mxu0 %v488
          %635 = vmatpush.msra.mxu0 %v480
          %636 = vmatpush.msra.mxu0 %v472
          %637 = vmatpush.msra.mxu0 %v464
          %638 = vmatpush.msra.mxu0 %v456
          %639 = vmatpush.msra.mxu0 %v448
          %640 = vmatpush.msra.mxu0 %v440
          %641 = vmatpush.msra.mxu0 %v432
          %642 = vmatpush.msra.mxu0 %v424
          %643 = vmatmul.f32.gmra.mxu0 %v420
          %v644 = vpop.f32.mrf.mxu0
          %v645 = vadd.f32 %v554, %v644
          %646 = vdwg.mxu0
          %647 = vmatpush.msra.mxu0 %v545
          %648 = vmatpush.msra.mxu0 %v537
          %649 = vmatpush.msra.mxu0 %v529
          %650 = vmatpush.msra.mxu0 %v521
          %651 = vmatpush.msra.mxu0 %v513
          %652 = vmatpush.msra.mxu0 %v505
          %653 = vmatpush.msra.mxu0 %v497
          %654 = vmatpush.msra.mxu0 %v489
          %655 = vmatpush.msra.mxu0 %v481
          %656 = vmatpush.msra.mxu0 %v473
          %657 = vmatpush.msra.mxu0 %v465
          %658 = vmatpush.msra.mxu0 %v457
          %659 = vmatpush.msra.mxu0 %v449
          %660 = vmatpush.msra.mxu0 %v441
          %661 = vmatpush.msra.mxu0 %v433
          %662 = vmatpush.msra.mxu0 %v425
          %663 = vmatmul.f32.gmra.mxu0 %v420
          %v664 = vpop.f32.mrf.mxu0
          %v665 = vadd.f32 %v555, %v664
          %666 = vdwg.mxu0
          %667 = vmatpush.msra.mxu0 %v546
          %668 = vmatpush.msra.mxu0 %v538
          %669 = vmatpush.msra.mxu0 %v530
          %670 = vmatpush.msra.mxu0 %v522
          %671 = vmatpush.msra.mxu0 %v514
          %672 = vmatpush.msra.mxu0 %v506
          %673 = vmatpush.msra.mxu0 %v498
          %674 = vmatpush.msra.mxu0 %v490
          %675 = vmatpush.msra.mxu0 %v482
          %676 = vmatpush.msra.mxu0 %v474
          %677 = vmatpush.msra.mxu0 %v466
          %678 = vmatpush.msra.mxu0 %v458
          %679 = vmatpush.msra.mxu0 %v450
          %680 = vmatpush.msra.mxu0 %v442
          %681 = vmatpush.msra.mxu0 %v434
          %682 = vmatpush.msra.mxu0 %v426
          %683 = vmatmul.f32.gmra.mxu0 %v420
          %v684 = vpop.f32.mrf.mxu0
          %v685 = vadd.f32 %v556, %v684
          %686 = vdwg.mxu0
          %687 = vmatpush.msra.mxu0 %v547
          %688 = vmatpush.msra.mxu0 %v539
          %689 = vmatpush.msra.mxu0 %v531
          %690 = vmatpush.msra.mxu0 %v523
          %691 = vmatpush.msra.mxu0 %v515
          %692 = vmatpush.msra.mxu0 %v507
          %693 = vmatpush.msra.mxu0 %v499
          %694 = vmatpush.msra.mxu0 %v491
          %695 = vmatpush.msra.mxu0 %v483
          %696 = vmatpush.msra.mxu0 %v475
          %697 = vmatpush.msra.mxu0 %v467
          %698 = vmatpush.msra.mxu0 %v459
          %699 = vmatpush.msra.mxu0 %v451
          %700 = vmatpush.msra.mxu0 %v443
          %701 = vmatpush.msra.mxu0 %v435
          %702 = vmatpush.msra.mxu0 %v427
          %703 = vmatmul.f32.gmra.mxu0 %v420
          %v704 = vpop.f32.mrf.mxu0
          %v705 = vadd.f32 %v557, %v704
          %706 = vdwg.mxu0
          %707 = vmatpush.msra.mxu0 %v548
          %708 = vmatpush.msra.mxu0 %v540
          %709 = vmatpush.msra.mxu0 %v532
          %710 = vmatpush.msra.mxu0 %v524
          %711 = vmatpush.msra.mxu0 %v516
          %712 = vmatpush.msra.mxu0 %v508
          %713 = vmatpush.msra.mxu0 %v500
          %714 = vmatpush.msra.mxu0 %v492
          %715 = vmatpush.msra.mxu0 %v484
          %716 = vmatpush.msra.mxu0 %v476
          %717 = vmatpush.msra.mxu0 %v468
          %718 = vmatpush.msra.mxu0 %v460
          %719 = vmatpush.msra.mxu0 %v452
          %720 = vmatpush.msra.mxu0 %v444
          %721 = vmatpush.msra.mxu0 %v436
          %722 = vmatpush.msra.mxu0 %v428
          %723 = vmatmul.f32.gmra.mxu0 %v420
          %v724 = vpop.f32.mrf.mxu0
          %v725 = vadd.f32 %v558, %v724
          %726 = vdwg.mxu0
          %v727 = vld [vmem:[#allocation10] sm:$0xff]
          %v728 = vld [vmem:[#allocation10 + $0x8] sm:$0xff]
          %v729 = vld [vmem:[#allocation10 + $0x10] sm:$0xff]
          %v730 = vld [vmem:[#allocation10 + $0x18] sm:$0xff]
          %v731 = vld [vmem:[#allocation10 + $0x20] sm:$0xff]
          %v732 = vld [vmem:[#allocation10 + $0x28] sm:$0xff]
          %v733 = vld [vmem:[#allocation10 + $0x30] sm:$0xff]
          %v734 = vld [vmem:[#allocation10 + $0x38] sm:$0xff]
          %v735 = vld [vmem:[#allocation10 + $0x40] sm:$0xff]
          %v736 = vld [vmem:[#allocation10 + $0x48] sm:$0xff]
          %v737 = vld [vmem:[#allocation10 + $0x50] sm:$0xff]
          %v738 = vld [vmem:[#allocation10 + $0x58] sm:$0xff]
          %v739 = vld [vmem:[#allocation10 + $0x60] sm:$0xff]
          %v740 = vld [vmem:[#allocation10 + $0x68] sm:$0xff]
          %v741 = vld [vmem:[#allocation10 + $0x70] sm:$0xff]
          %v742 = vld [vmem:[#allocation10 + $0x78] sm:$0xff]
          %v743 = vld [vmem:[#allocation10 + $0x80] sm:$0xff]
          %v744 = vld [vmem:[#allocation10 + $0x88] sm:$0xff]
          %v745 = vld [vmem:[#allocation10 + $0x90] sm:$0xff]
          %v746 = vld [vmem:[#allocation10 + $0x98] sm:$0xff]
          %v747 = vld [vmem:[#allocation10 + $0xa0] sm:$0xff]
          %v748 = vld [vmem:[#allocation10 + $0xa8] sm:$0xff]
          %v749 = vld [vmem:[#allocation10 + $0xb0] sm:$0xff]
          %v750 = vld [vmem:[#allocation10 + $0xb8] sm:$0xff]
          %v751 = vld [vmem:[#allocation10 + $0xc0] sm:$0xff]
          %v752 = vld [vmem:[#allocation10 + $0xc8] sm:$0xff]
          %v753 = vld [vmem:[#allocation10 + $0xd0] sm:$0xff]
          %v754 = vld [vmem:[#allocation10 + $0xd8] sm:$0xff]
          %v755 = vld [vmem:[#allocation10 + $0xe0] sm:$0xff]
          %v756 = vld [vmem:[#allocation10 + $0xe8] sm:$0xff]
          %v757 = vld [vmem:[#allocation10 + $0xf0] sm:$0xff]
          %v758 = vld [vmem:[#allocation10 + $0xf8] sm:$0xff]
          %v759 = vld [vmem:[#allocation10 + $0x100] sm:$0xff]
          %v760 = vld [vmem:[#allocation10 + $0x108] sm:$0xff]
          %v761 = vld [vmem:[#allocation10 + $0x110] sm:$0xff]
          %v762 = vld [vmem:[#allocation10 + $0x118] sm:$0xff]
          %v763 = vld [vmem:[#allocation10 + $0x120] sm:$0xff]
          %v764 = vld [vmem:[#allocation10 + $0x128] sm:$0xff]
          %v765 = vld [vmem:[#allocation10 + $0x130] sm:$0xff]
          %v766 = vld [vmem:[#allocation10 + $0x138] sm:$0xff]
          %v767 = vld [vmem:[#allocation10 + $0x140] sm:$0xff]
          %v768 = vld [vmem:[#allocation10 + $0x148] sm:$0xff]
          %v769 = vld [vmem:[#allocation10 + $0x150] sm:$0xff]
          %v770 = vld [vmem:[#allocation10 + $0x158] sm:$0xff]
          %v771 = vld [vmem:[#allocation10 + $0x160] sm:$0xff]
          %v772 = vld [vmem:[#allocation10 + $0x168] sm:$0xff]
          %v773 = vld [vmem:[#allocation10 + $0x170] sm:$0xff]
          %v774 = vld [vmem:[#allocation10 + $0x178] sm:$0xff]
          %v775 = vld [vmem:[#allocation10 + $0x180] sm:$0xff]
          %v776 = vld [vmem:[#allocation10 + $0x188] sm:$0xff]
          %v777 = vld [vmem:[#allocation10 + $0x190] sm:$0xff]
          %v778 = vld [vmem:[#allocation10 + $0x198] sm:$0xff]
          %v779 = vld [vmem:[#allocation10 + $0x1a0] sm:$0xff]
          %v780 = vld [vmem:[#allocation10 + $0x1a8] sm:$0xff]
          %v781 = vld [vmem:[#allocation10 + $0x1b0] sm:$0xff]
          %v782 = vld [vmem:[#allocation10 + $0x1b8] sm:$0xff]
          %v783 = vld [vmem:[#allocation10 + $0x1c0] sm:$0xff]
          %v784 = vld [vmem:[#allocation10 + $0x1c8] sm:$0xff]
          %v785 = vld [vmem:[#allocation10 + $0x1d0] sm:$0xff]
          %v786 = vld [vmem:[#allocation10 + $0x1d8] sm:$0xff]
          %v787 = vld [vmem:[#allocation10 + $0x1e0] sm:$0xff]
          %v788 = vld [vmem:[#allocation10 + $0x1e8] sm:$0xff]
          %v789 = vld [vmem:[#allocation10 + $0x1f0] sm:$0xff]
          %v790 = vld [vmem:[#allocation10 + $0x1f8] sm:$0xff]
          %v791 = vld [vmem:[#allocation10 + $0x200] sm:$0xff]
          %v792 = vld [vmem:[#allocation10 + $0x208] sm:$0xff]
          %v793 = vld [vmem:[#allocation10 + $0x210] sm:$0xff]
          %v794 = vld [vmem:[#allocation10 + $0x218] sm:$0xff]
          %v795 = vld [vmem:[#allocation10 + $0x220] sm:$0xff]
          %v796 = vld [vmem:[#allocation10 + $0x228] sm:$0xff]
          %v797 = vld [vmem:[#allocation10 + $0x230] sm:$0xff]
          %v798 = vld [vmem:[#allocation10 + $0x238] sm:$0xff]
          %v799 = vld [vmem:[#allocation10 + $0x240] sm:$0xff]
          %v800 = vld [vmem:[#allocation10 + $0x248] sm:$0xff]
          %v801 = vld [vmem:[#allocation10 + $0x250] sm:$0xff]
          %v802 = vld [vmem:[#allocation10 + $0x258] sm:$0xff]
          %v803 = vld [vmem:[#allocation10 + $0x260] sm:$0xff]
          %v804 = vld [vmem:[#allocation10 + $0x268] sm:$0xff]
          %v805 = vld [vmem:[#allocation10 + $0x270] sm:$0xff]
          %v806 = vld [vmem:[#allocation10 + $0x278] sm:$0xff]
          %v807 = vld [vmem:[#allocation10 + $0x280] sm:$0xff]
          %v808 = vld [vmem:[#allocation10 + $0x288] sm:$0xff]
          %v809 = vld [vmem:[#allocation10 + $0x290] sm:$0xff]
          %v810 = vld [vmem:[#allocation10 + $0x298] sm:$0xff]
          %v811 = vld [vmem:[#allocation10 + $0x2a0] sm:$0xff]
          %v812 = vld [vmem:[#allocation10 + $0x2a8] sm:$0xff]
          %v813 = vld [vmem:[#allocation10 + $0x2b0] sm:$0xff]
          %v814 = vld [vmem:[#allocation10 + $0x2b8] sm:$0xff]
          %v815 = vld [vmem:[#allocation10 + $0x2c0] sm:$0xff]
          %v816 = vld [vmem:[#allocation10 + $0x2c8] sm:$0xff]
          %v817 = vld [vmem:[#allocation10 + $0x2d0] sm:$0xff]
          %v818 = vld [vmem:[#allocation10 + $0x2d8] sm:$0xff]
          %v819 = vld [vmem:[#allocation10 + $0x2e0] sm:$0xff]
          %v820 = vld [vmem:[#allocation10 + $0x2e8] sm:$0xff]
          %v821 = vld [vmem:[#allocation10 + $0x2f0] sm:$0xff]
          %v822 = vld [vmem:[#allocation10 + $0x2f8] sm:$0xff]
          %v823 = vld [vmem:[#allocation10 + $0x300] sm:$0xff]
          %v824 = vld [vmem:[#allocation10 + $0x308] sm:$0xff]
          %v825 = vld [vmem:[#allocation10 + $0x310] sm:$0xff]
          %v826 = vld [vmem:[#allocation10 + $0x318] sm:$0xff]
          %v827 = vld [vmem:[#allocation10 + $0x320] sm:$0xff]
          %v828 = vld [vmem:[#allocation10 + $0x328] sm:$0xff]
          %v829 = vld [vmem:[#allocation10 + $0x330] sm:$0xff]
          %v830 = vld [vmem:[#allocation10 + $0x338] sm:$0xff]
          %v831 = vld [vmem:[#allocation10 + $0x340] sm:$0xff]
          %v832 = vld [vmem:[#allocation10 + $0x348] sm:$0xff]
          %v833 = vld [vmem:[#allocation10 + $0x350] sm:$0xff]
          %v834 = vld [vmem:[#allocation10 + $0x358] sm:$0xff]
          %v835 = vld [vmem:[#allocation10 + $0x360] sm:$0xff]
          %v836 = vld [vmem:[#allocation10 + $0x368] sm:$0xff]
          %v837 = vld [vmem:[#allocation10 + $0x370] sm:$0xff]
          %v838 = vld [vmem:[#allocation10 + $0x378] sm:$0xff]
          %v839 = vld [vmem:[#allocation10 + $0x380] sm:$0xff]
          %v840 = vld [vmem:[#allocation10 + $0x388] sm:$0xff]
          %v841 = vld [vmem:[#allocation10 + $0x390] sm:$0xff]
          %v842 = vld [vmem:[#allocation10 + $0x398] sm:$0xff]
          %v843 = vld [vmem:[#allocation10 + $0x3a0] sm:$0xff]
          %v844 = vld [vmem:[#allocation10 + $0x3a8] sm:$0xff]
          %v845 = vld [vmem:[#allocation10 + $0x3b0] sm:$0xff]
          %v846 = vld [vmem:[#allocation10 + $0x3b8] sm:$0xff]
          %v847 = vld [vmem:[#allocation10 + $0x3c0] sm:$0xff]
          %v848 = vld [vmem:[#allocation10 + $0x3c8] sm:$0xff]
          %v849 = vld [vmem:[#allocation10 + $0x3d0] sm:$0xff]
          %v850 = vld [vmem:[#allocation10 + $0x3d8] sm:$0xff]
          %v851 = vld [vmem:[#allocation10 + $0x3e0] sm:$0xff]
          %v852 = vld [vmem:[#allocation10 + $0x3e8] sm:$0xff]
          %v853 = vld [vmem:[#allocation10 + $0x3f0] sm:$0xff]
          %v854 = vld [vmem:[#allocation10 + $0x3f8] sm:$0xff]
          %v855 = vld [vmem:[#allocation10 + $0x400] sm:$0xff]
          %v856 = vld [vmem:[#allocation10 + $0x408] sm:$0xff]
          %v857 = vld [vmem:[#allocation10 + $0x410] sm:$0xff]
          %v858 = vld [vmem:[#allocation10 + $0x418] sm:$0xff]
          %v859 = vld [vmem:[#allocation10 + $0x420] sm:$0xff]
          %v860 = vld [vmem:[#allocation10 + $0x428] sm:$0xff]
          %v861 = vld [vmem:[#allocation10 + $0x430] sm:$0xff]
          %v862 = vld [vmem:[#allocation10 + $0x438] sm:$0xff]
          %v863 = vld [vmem:[#allocation10 + $0x440] sm:$0xff]
          %v864 = vld [vmem:[#allocation10 + $0x448] sm:$0xff]
          %v865 = vld [vmem:[#allocation10 + $0x450] sm:$0xff]
          %v866 = vld [vmem:[#allocation10 + $0x458] sm:$0xff]
          %v867 = vld [vmem:[#allocation10 + $0x460] sm:$0xff]
          %v868 = vld [vmem:[#allocation10 + $0x468] sm:$0xff]
          %v869 = vld [vmem:[#allocation10 + $0x470] sm:$0xff]
          %v870 = vld [vmem:[#allocation10 + $0x478] sm:$0xff]
          %v871 = vld [vmem:[#allocation10 + $0x480] sm:$0xff]
          %v872 = vld [vmem:[#allocation10 + $0x488] sm:$0xff]
          %v873 = vld [vmem:[#allocation10 + $0x490] sm:$0xff]
          %v874 = vld [vmem:[#allocation10 + $0x498] sm:$0xff]
          %v875 = vld [vmem:[#allocation10 + $0x4a0] sm:$0xff]
          %v876 = vld [vmem:[#allocation10 + $0x4a8] sm:$0xff]
          %v877 = vld [vmem:[#allocation10 + $0x4b0] sm:$0xff]
          %v878 = vld [vmem:[#allocation10 + $0x4b8] sm:$0xff]
          %v879 = vld [vmem:[#allocation10 + $0x4c0] sm:$0xff]
          %v880 = vld [vmem:[#allocation10 + $0x4c8] sm:$0xff]
          %v881 = vld [vmem:[#allocation10 + $0x4d0] sm:$0xff]
          %v882 = vld [vmem:[#allocation10 + $0x4d8] sm:$0xff]
          %v883 = vld [vmem:[#allocation10 + $0x4e0] sm:$0xff]
          %v884 = vld [vmem:[#allocation10 + $0x4e8] sm:$0xff]
          %v885 = vld [vmem:[#allocation10 + $0x4f0] sm:$0xff]
          %v886 = vld [vmem:[#allocation10 + $0x4f8] sm:$0xff]
          %v887 = vld [vmem:[#allocation10 + $0x500] sm:$0xff]
          %v888 = vld [vmem:[#allocation10 + $0x508] sm:$0xff]
          %v889 = vld [vmem:[#allocation10 + $0x510] sm:$0xff]
          %v890 = vld [vmem:[#allocation10 + $0x518] sm:$0xff]
          %v891 = vld [vmem:[#allocation10 + $0x520] sm:$0xff]
          %v892 = vld [vmem:[#allocation10 + $0x528] sm:$0xff]
          %v893 = vld [vmem:[#allocation10 + $0x530] sm:$0xff]
          %v894 = vld [vmem:[#allocation10 + $0x538] sm:$0xff]
          %v895 = vld [vmem:[#allocation10 + $0x540] sm:$0xff]
          %v896 = vld [vmem:[#allocation10 + $0x548] sm:$0xff]
          %v897 = vld [vmem:[#allocation10 + $0x550] sm:$0xff]
          %v898 = vld [vmem:[#allocation10 + $0x558] sm:$0xff]
          %v899 = vld [vmem:[#allocation10 + $0x560] sm:$0xff]
          %v900 = vld [vmem:[#allocation10 + $0x568] sm:$0xff]
          %v901 = vld [vmem:[#allocation10 + $0x570] sm:$0xff]
          %v902 = vld [vmem:[#allocation10 + $0x578] sm:$0xff]
          %v903 = vld [vmem:[#allocation10 + $0x580] sm:$0xff]
          %v904 = vld [vmem:[#allocation10 + $0x588] sm:$0xff]
          %v905 = vld [vmem:[#allocation10 + $0x590] sm:$0xff]
          %v906 = vld [vmem:[#allocation10 + $0x598] sm:$0xff]
          %v907 = vld [vmem:[#allocation10 + $0x5a0] sm:$0xff]
          %v908 = vld [vmem:[#allocation10 + $0x5a8] sm:$0xff]
          %v909 = vld [vmem:[#allocation10 + $0x5b0] sm:$0xff]
          %v910 = vld [vmem:[#allocation10 + $0x5b8] sm:$0xff]
          %v911 = vld [vmem:[#allocation10 + $0x5c0] sm:$0xff]
          %v912 = vld [vmem:[#allocation10 + $0x5c8] sm:$0xff]
          %v913 = vld [vmem:[#allocation10 + $0x5d0] sm:$0xff]
          %v914 = vld [vmem:[#allocation10 + $0x5d8] sm:$0xff]
          %v915 = vld [vmem:[#allocation10 + $0x5e0] sm:$0xff]
          %v916 = vld [vmem:[#allocation10 + $0x5e8] sm:$0xff]
          %v917 = vld [vmem:[#allocation10 + $0x5f0] sm:$0xff]
          %v918 = vld [vmem:[#allocation10 + $0x5f8] sm:$0xff]
          %v919 = vld [vmem:[#allocation10 + $0x600] sm:$0xff]
          %v920 = vld [vmem:[#allocation10 + $0x608] sm:$0xff]
          %v921 = vld [vmem:[#allocation10 + $0x610] sm:$0xff]
          %v922 = vld [vmem:[#allocation10 + $0x618] sm:$0xff]
          %v923 = vld [vmem:[#allocation10 + $0x620] sm:$0xff]
          %v924 = vld [vmem:[#allocation10 + $0x628] sm:$0xff]
          %v925 = vld [vmem:[#allocation10 + $0x630] sm:$0xff]
          %v926 = vld [vmem:[#allocation10 + $0x638] sm:$0xff]
          %v927 = vld [vmem:[#allocation10 + $0x640] sm:$0xff]
          %v928 = vld [vmem:[#allocation10 + $0x648] sm:$0xff]
          %v929 = vld [vmem:[#allocation10 + $0x650] sm:$0xff]
          %v930 = vld [vmem:[#allocation10 + $0x658] sm:$0xff]
          %v931 = vld [vmem:[#allocation10 + $0x660] sm:$0xff]
          %v932 = vld [vmem:[#allocation10 + $0x668] sm:$0xff]
          %v933 = vld [vmem:[#allocation10 + $0x670] sm:$0xff]
          %v934 = vld [vmem:[#allocation10 + $0x678] sm:$0xff]
          %v935 = vld [vmem:[#allocation10 + $0x680] sm:$0xff]
          %v936 = vld [vmem:[#allocation10 + $0x688] sm:$0xff]
          %v937 = vld [vmem:[#allocation10 + $0x690] sm:$0xff]
          %v938 = vld [vmem:[#allocation10 + $0x698] sm:$0xff]
          %v939 = vld [vmem:[#allocation10 + $0x6a0] sm:$0xff]
          %v940 = vld [vmem:[#allocation10 + $0x6a8] sm:$0xff]
          %v941 = vld [vmem:[#allocation10 + $0x6b0] sm:$0xff]
          %v942 = vld [vmem:[#allocation10 + $0x6b8] sm:$0xff]
          %v943 = vld [vmem:[#allocation10 + $0x6c0] sm:$0xff]
          %v944 = vld [vmem:[#allocation10 + $0x6c8] sm:$0xff]
          %v945 = vld [vmem:[#allocation10 + $0x6d0] sm:$0xff]
          %v946 = vld [vmem:[#allocation10 + $0x6d8] sm:$0xff]
          %v947 = vld [vmem:[#allocation10 + $0x6e0] sm:$0xff]
          %v948 = vld [vmem:[#allocation10 + $0x6e8] sm:$0xff]
          %v949 = vld [vmem:[#allocation10 + $0x6f0] sm:$0xff]
          %v950 = vld [vmem:[#allocation10 + $0x6f8] sm:$0xff]
          %v951 = vld [vmem:[#allocation10 + $0x700] sm:$0xff]
          %v952 = vld [vmem:[#allocation10 + $0x708] sm:$0xff]
          %v953 = vld [vmem:[#allocation10 + $0x710] sm:$0xff]
          %v954 = vld [vmem:[#allocation10 + $0x718] sm:$0xff]
          %v955 = vld [vmem:[#allocation10 + $0x720] sm:$0xff]
          %v956 = vld [vmem:[#allocation10 + $0x728] sm:$0xff]
          %v957 = vld [vmem:[#allocation10 + $0x730] sm:$0xff]
          %v958 = vld [vmem:[#allocation10 + $0x738] sm:$0xff]
          %v959 = vld [vmem:[#allocation10 + $0x740] sm:$0xff]
          %v960 = vld [vmem:[#allocation10 + $0x748] sm:$0xff]
          %v961 = vld [vmem:[#allocation10 + $0x750] sm:$0xff]
          %v962 = vld [vmem:[#allocation10 + $0x758] sm:$0xff]
          %v963 = vld [vmem:[#allocation10 + $0x760] sm:$0xff]
          %v964 = vld [vmem:[#allocation10 + $0x768] sm:$0xff]
          %v965 = vld [vmem:[#allocation10 + $0x770] sm:$0xff]
          %v966 = vld [vmem:[#allocation10 + $0x778] sm:$0xff]
          %v967 = vld [vmem:[#allocation10 + $0x780] sm:$0xff]
          %v968 = vld [vmem:[#allocation10 + $0x788] sm:$0xff]
          %v969 = vld [vmem:[#allocation10 + $0x790] sm:$0xff]
          %v970 = vld [vmem:[#allocation10 + $0x798] sm:$0xff]
          %v971 = vld [vmem:[#allocation10 + $0x7a0] sm:$0xff]
          %v972 = vld [vmem:[#allocation10 + $0x7a8] sm:$0xff]
          %v973 = vld [vmem:[#allocation10 + $0x7b0] sm:$0xff]
          %v974 = vld [vmem:[#allocation10 + $0x7b8] sm:$0xff]
          %v975 = vld [vmem:[#allocation10 + $0x7c0] sm:$0xff]
          %v976 = vld [vmem:[#allocation10 + $0x7c8] sm:$0xff]
          %v977 = vld [vmem:[#allocation10 + $0x7d0] sm:$0xff]
          %v978 = vld [vmem:[#allocation10 + $0x7d8] sm:$0xff]
          %v979 = vld [vmem:[#allocation10 + $0x7e0] sm:$0xff]
          %v980 = vld [vmem:[#allocation10 + $0x7e8] sm:$0xff]
          %v981 = vld [vmem:[#allocation10 + $0x7f0] sm:$0xff]
          %v982 = vld [vmem:[#allocation10 + $0x7f8] sm:$0xff]
          %v983 = vld [vmem:[%s4] sm:$0x3]
          %v985 = vperm.slane %v983, 0
          %v986 = vperm.slane %v983, 1
          %989 = vmatpush.msra.mxu0 %v757
          %990 = vmatpush.msra.mxu0 %v755
          %991 = vmatpush.msra.mxu0 %v753
          %992 = vmatpush.msra.mxu0 %v751
          %993 = vmatpush.msra.mxu0 %v749
          %994 = vmatpush.msra.mxu0 %v747
          %995 = vmatpush.msra.mxu0 %v745
          %996 = vmatpush.msra.mxu0 %v743
          %997 = vmatpush.msra.mxu0 %v741
          %998 = vmatpush.msra.mxu0 %v739
          %999 = vmatpush.msra.mxu0 %v737
          %1000 = vmatpush.msra.mxu0 %v735
          %1001 = vmatpush.msra.mxu0 %v733
          %1002 = vmatpush.msra.mxu0 %v731
          %1003 = vmatpush.msra.mxu0 %v729
          %1004 = vmatpush.msra.mxu0 %v727
          %1005 = vmatmul.f32.gmra.mxu0 %v585
          %v1006 = vpop.f32.mrf.mxu0
          %v1007 = vadd.f32 %v985, %v1006
          %1008 = vdwg.mxu0
          %1009 = vmatpush.msra.mxu0 %v789
          %1010 = vmatpush.msra.mxu0 %v787
          %1011 = vmatpush.msra.mxu0 %v785
          %1012 = vmatpush.msra.mxu0 %v783
          %1013 = vmatpush.msra.mxu0 %v781
          %1014 = vmatpush.msra.mxu0 %v779
          %1015 = vmatpush.msra.mxu0 %v777
          %1016 = vmatpush.msra.mxu0 %v775
          %1017 = vmatpush.msra.mxu0 %v773
          %1018 = vmatpush.msra.mxu0 %v771
          %1019 = vmatpush.msra.mxu0 %v769
          %1020 = vmatpush.msra.mxu0 %v767
          %1021 = vmatpush.msra.mxu0 %v765
          %1022 = vmatpush.msra.mxu0 %v763
          %1023 = vmatpush.msra.mxu0 %v761
          %1024 = vmatpush.msra.mxu0 %v759
          %1025 = vmatmul.f32.gmra.mxu0 %v605
          %v1026 = vpop.f32.mrf.mxu0
          %v1027 = vadd.f32 %v1007, %v1026
          %1028 = vdwg.mxu0
          %1029 = vmatpush.msra.mxu0 %v821
          %1030 = vmatpush.msra.mxu0 %v819
          %1031 = vmatpush.msra.mxu0 %v817
          %1032 = vmatpush.msra.mxu0 %v815
          %1033 = vmatpush.msra.mxu0 %v813
          %1034 = vmatpush.msra.mxu0 %v811
          %1035 = vmatpush.msra.mxu0 %v809
          %1036 = vmatpush.msra.mxu0 %v807
          %1037 = vmatpush.msra.mxu0 %v805
          %1038 = vmatpush.msra.mxu0 %v803
          %1039 = vmatpush.msra.mxu0 %v801
          %1040 = vmatpush.msra.mxu0 %v799
          %1041 = vmatpush.msra.mxu0 %v797
          %1042 = vmatpush.msra.mxu0 %v795
          %1043 = vmatpush.msra.mxu0 %v793
          %1044 = vmatpush.msra.mxu0 %v791
          %1045 = vmatmul.f32.gmra.mxu0 %v625
          %v1046 = vpop.f32.mrf.mxu0
          %v1047 = vadd.f32 %v1027, %v1046
          %1048 = vdwg.mxu0
          %1049 = vmatpush.msra.mxu0 %v853
          %1050 = vmatpush.msra.mxu0 %v851
          %1051 = vmatpush.msra.mxu0 %v849
          %1052 = vmatpush.msra.mxu0 %v847
          %1053 = vmatpush.msra.mxu0 %v845
          %1054 = vmatpush.msra.mxu0 %v843
          %1055 = vmatpush.msra.mxu0 %v841
          %1056 = vmatpush.msra.mxu0 %v839
          %1057 = vmatpush.msra.mxu0 %v837
          %1058 = vmatpush.msra.mxu0 %v835
          %1059 = vmatpush.msra.mxu0 %v833
          %1060 = vmatpush.msra.mxu0 %v831
          %1061 = vmatpush.msra.mxu0 %v829
          %1062 = vmatpush.msra.mxu0 %v827
          %1063 = vmatpush.msra.mxu0 %v825
          %1064 = vmatpush.msra.mxu0 %v823
          %1065 = vmatmul.f32.gmra.mxu0 %v645
          %v1066 = vpop.f32.mrf.mxu0
          %v1067 = vadd.f32 %v1047, %v1066
          %1068 = vdwg.mxu0
          %1069 = vmatpush.msra.mxu0 %v885
          %1070 = vmatpush.msra.mxu0 %v883
          %1071 = vmatpush.msra.mxu0 %v881
          %1072 = vmatpush.msra.mxu0 %v879
          %1073 = vmatpush.msra.mxu0 %v877
          %1074 = vmatpush.msra.mxu0 %v875
          %1075 = vmatpush.msra.mxu0 %v873
          %1076 = vmatpush.msra.mxu0 %v871
          %1077 = vmatpush.msra.mxu0 %v869
          %1078 = vmatpush.msra.mxu0 %v867
          %1079 = vmatpush.msra.mxu0 %v865
          %1080 = vmatpush.msra.mxu0 %v863
          %1081 = vmatpush.msra.mxu0 %v861
          %1082 = vmatpush.msra.mxu0 %v859
          %1083 = vmatpush.msra.mxu0 %v857
          %1084 = vmatpush.msra.mxu0 %v855
          %1085 = vmatmul.f32.gmra.mxu0 %v665
          %v1086 = vpop.f32.mrf.mxu0
          %v1087 = vadd.f32 %v1067, %v1086
          %1088 = vdwg.mxu0
          %1089 = vmatpush.msra.mxu0 %v917
          %1090 = vmatpush.msra.mxu0 %v915
          %1091 = vmatpush.msra.mxu0 %v913
          %1092 = vmatpush.msra.mxu0 %v911
          %1093 = vmatpush.msra.mxu0 %v909
          %1094 = vmatpush.msra.mxu0 %v907
          %1095 = vmatpush.msra.mxu0 %v905
          %1096 = vmatpush.msra.mxu0 %v903
          %1097 = vmatpush.msra.mxu0 %v901
          %1098 = vmatpush.msra.mxu0 %v899
          %1099 = vmatpush.msra.mxu0 %v897
          %1100 = vmatpush.msra.mxu0 %v895
          %1101 = vmatpush.msra.mxu0 %v893
          %1102 = vmatpush.msra.mxu0 %v891
          %1103 = vmatpush.msra.mxu0 %v889
          %1104 = vmatpush.msra.mxu0 %v887
          %1105 = vmatmul.f32.gmra.mxu0 %v685
          %v1106 = vpop.f32.mrf.mxu0
          %v1107 = vadd.f32 %v1087, %v1106
          %1108 = vdwg.mxu0
          %1109 = vmatpush.msra.mxu0 %v949
          %1110 = vmatpush.msra.mxu0 %v947
          %1111 = vmatpush.msra.mxu0 %v945
          %1112 = vmatpush.msra.mxu0 %v943
          %1113 = vmatpush.msra.mxu0 %v941
          %1114 = vmatpush.msra.mxu0 %v939
          %1115 = vmatpush.msra.mxu0 %v937
          %1116 = vmatpush.msra.mxu0 %v935
          %1117 = vmatpush.msra.mxu0 %v933
          %1118 = vmatpush.msra.mxu0 %v931
          %1119 = vmatpush.msra.mxu0 %v929
          %1120 = vmatpush.msra.mxu0 %v927
          %1121 = vmatpush.msra.mxu0 %v925
          %1122 = vmatpush.msra.mxu0 %v923
          %1123 = vmatpush.msra.mxu0 %v921
          %1124 = vmatpush.msra.mxu0 %v919
          %1125 = vmatmul.f32.gmra.mxu0 %v705
          %v1126 = vpop.f32.mrf.mxu0
          %v1127 = vadd.f32 %v1107, %v1126
          %1128 = vdwg.mxu0
          %1129 = vmatpush.msra.mxu0 %v981
          %1130 = vmatpush.msra.mxu0 %v979
          %1131 = vmatpush.msra.mxu0 %v977
          %1132 = vmatpush.msra.mxu0 %v975
          %1133 = vmatpush.msra.mxu0 %v973
          %1134 = vmatpush.msra.mxu0 %v971
          %1135 = vmatpush.msra.mxu0 %v969
          %1136 = vmatpush.msra.mxu0 %v967
          %1137 = vmatpush.msra.mxu0 %v965
          %1138 = vmatpush.msra.mxu0 %v963
          %1139 = vmatpush.msra.mxu0 %v961
          %1140 = vmatpush.msra.mxu0 %v959
          %1141 = vmatpush.msra.mxu0 %v957
          %1142 = vmatpush.msra.mxu0 %v955
          %1143 = vmatpush.msra.mxu0 %v953
          %1144 = vmatpush.msra.mxu0 %v951
          %1145 = vmatmul.f32.gmra.mxu0 %v725
          %v1146 = vpop.f32.mrf.mxu0
          %v1147 = vadd.f32 %v1127, %v1146
          %1148 = vdwg.mxu0
          %1149 = vmatpush.msra.mxu0 %v758
          %1150 = vmatpush.msra.mxu0 %v756
          %1151 = vmatpush.msra.mxu0 %v754
          %1152 = vmatpush.msra.mxu0 %v752
          %1153 = vmatpush.msra.mxu0 %v750
          %1154 = vmatpush.msra.mxu0 %v748
          %1155 = vmatpush.msra.mxu0 %v746
          %1156 = vmatpush.msra.mxu0 %v744
          %1157 = vmatpush.msra.mxu0 %v742
          %1158 = vmatpush.msra.mxu0 %v740
          %1159 = vmatpush.msra.mxu0 %v738
          %1160 = vmatpush.msra.mxu0 %v736
          %1161 = vmatpush.msra.mxu0 %v734
          %1162 = vmatpush.msra.mxu0 %v732
          %1163 = vmatpush.msra.mxu0 %v730
          %1164 = vmatpush.msra.mxu0 %v728
          %1165 = vmatmul.f32.gmra.mxu0 %v585
          %v1166 = vpop.f32.mrf.mxu0
          %v1167 = vadd.f32 %v986, %v1166
          %1168 = vdwg.mxu0
          %1169 = vmatpush.msra.mxu0 %v790
          %1170 = vmatpush.msra.mxu0 %v788
          %1171 = vmatpush.msra.mxu0 %v786
          %1172 = vmatpush.msra.mxu0 %v784
          %1173 = vmatpush.msra.mxu0 %v782
          %1174 = vmatpush.msra.mxu0 %v780
          %1175 = vmatpush.msra.mxu0 %v778
          %1176 = vmatpush.msra.mxu0 %v776
          %1177 = vmatpush.msra.mxu0 %v774
          %1178 = vmatpush.msra.mxu0 %v772
          %1179 = vmatpush.msra.mxu0 %v770
          %1180 = vmatpush.msra.mxu0 %v768
          %1181 = vmatpush.msra.mxu0 %v766
          %1182 = vmatpush.msra.mxu0 %v764
          %1183 = vmatpush.msra.mxu0 %v762
          %1184 = vmatpush.msra.mxu0 %v760
          %1185 = vmatmul.f32.gmra.mxu0 %v605
          %v1186 = vpop.f32.mrf.mxu0
          %v1187 = vadd.f32 %v1167, %v1186
          %1188 = vdwg.mxu0
          %1189 = vmatpush.msra.mxu0 %v822
          %1190 = vmatpush.msra.mxu0 %v820
          %1191 = vmatpush.msra.mxu0 %v818
          %1192 = vmatpush.msra.mxu0 %v816
          %1193 = vmatpush.msra.mxu0 %v814
          %1194 = vmatpush.msra.mxu0 %v812
          %1195 = vmatpush.msra.mxu0 %v810
          %1196 = vmatpush.msra.mxu0 %v808
          %1197 = vmatpush.msra.mxu0 %v806
          %1198 = vmatpush.msra.mxu0 %v804
          %1199 = vmatpush.msra.mxu0 %v802
          %1200 = vmatpush.msra.mxu0 %v800
          %1201 = vmatpush.msra.mxu0 %v798
          %1202 = vmatpush.msra.mxu0 %v796
          %1203 = vmatpush.msra.mxu0 %v794
          %1204 = vmatpush.msra.mxu0 %v792
          %1205 = vmatmul.f32.gmra.mxu0 %v625
          %v1206 = vpop.f32.mrf.mxu0
          %v1207 = vadd.f32 %v1187, %v1206
          %1208 = vdwg.mxu0
          %1209 = vmatpush.msra.mxu0 %v854
          %1210 = vmatpush.msra.mxu0 %v852
          %1211 = vmatpush.msra.mxu0 %v850
          %1212 = vmatpush.msra.mxu0 %v848
          %1213 = vmatpush.msra.mxu0 %v846
          %1214 = vmatpush.msra.mxu0 %v844
          %1215 = vmatpush.msra.mxu0 %v842
          %1216 = vmatpush.msra.mxu0 %v840
          %1217 = vmatpush.msra.mxu0 %v838
          %1218 = vmatpush.msra.mxu0 %v836
          %1219 = vmatpush.msra.mxu0 %v834
          %1220 = vmatpush.msra.mxu0 %v832
          %1221 = vmatpush.msra.mxu0 %v830
          %1222 = vmatpush.msra.mxu0 %v828
          %1223 = vmatpush.msra.mxu0 %v826
          %1224 = vmatpush.msra.mxu0 %v824
          %1225 = vmatmul.f32.gmra.mxu0 %v645
          %v1226 = vpop.f32.mrf.mxu0
          %v1227 = vadd.f32 %v1207, %v1226
          %1228 = vdwg.mxu0
          %1229 = vmatpush.msra.mxu0 %v886
          %1230 = vmatpush.msra.mxu0 %v884
          %1231 = vmatpush.msra.mxu0 %v882
          %1232 = vmatpush.msra.mxu0 %v880
          %1233 = vmatpush.msra.mxu0 %v878
          %1234 = vmatpush.msra.mxu0 %v876
          %1235 = vmatpush.msra.mxu0 %v874
          %1236 = vmatpush.msra.mxu0 %v872
          %1237 = vmatpush.msra.mxu0 %v870
          %1238 = vmatpush.msra.mxu0 %v868
          %1239 = vmatpush.msra.mxu0 %v866
          %1240 = vmatpush.msra.mxu0 %v864
          %1241 = vmatpush.msra.mxu0 %v862
          %1242 = vmatpush.msra.mxu0 %v860
          %1243 = vmatpush.msra.mxu0 %v858
          %1244 = vmatpush.msra.mxu0 %v856
          %1245 = vmatmul.f32.gmra.mxu0 %v665
          %v1246 = vpop.f32.mrf.mxu0
          %v1247 = vadd.f32 %v1227, %v1246
          %1248 = vdwg.mxu0
          %1249 = vmatpush.msra.mxu0 %v918
          %1250 = vmatpush.msra.mxu0 %v916
          %1251 = vmatpush.msra.mxu0 %v914
          %1252 = vmatpush.msra.mxu0 %v912
          %1253 = vmatpush.msra.mxu0 %v910
          %1254 = vmatpush.msra.mxu0 %v908
          %1255 = vmatpush.msra.mxu0 %v906
          %1256 = vmatpush.msra.mxu0 %v904
          %1257 = vmatpush.msra.mxu0 %v902
          %1258 = vmatpush.msra.mxu0 %v900
          %1259 = vmatpush.msra.mxu0 %v898
          %1260 = vmatpush.msra.mxu0 %v896
          %1261 = vmatpush.msra.mxu0 %v894
          %1262 = vmatpush.msra.mxu0 %v892
          %1263 = vmatpush.msra.mxu0 %v890
          %1264 = vmatpush.msra.mxu0 %v888
          %1265 = vmatmul.f32.gmra.mxu0 %v685
          %v1266 = vpop.f32.mrf.mxu0
          %v1267 = vadd.f32 %v1247, %v1266
          %1268 = vdwg.mxu0
          %1269 = vmatpush.msra.mxu0 %v950
          %1270 = vmatpush.msra.mxu0 %v948
          %1271 = vmatpush.msra.mxu0 %v946
          %1272 = vmatpush.msra.mxu0 %v944
          %1273 = vmatpush.msra.mxu0 %v942
          %1274 = vmatpush.msra.mxu0 %v940
          %1275 = vmatpush.msra.mxu0 %v938
          %1276 = vmatpush.msra.mxu0 %v936
          %1277 = vmatpush.msra.mxu0 %v934
          %1278 = vmatpush.msra.mxu0 %v932
          %1279 = vmatpush.msra.mxu0 %v930
          %1280 = vmatpush.msra.mxu0 %v928
          %1281 = vmatpush.msra.mxu0 %v926
          %1282 = vmatpush.msra.mxu0 %v924
          %1283 = vmatpush.msra.mxu0 %v922
          %1284 = vmatpush.msra.mxu0 %v920
          %1285 = vmatmul.f32.gmra.mxu0 %v705
          %v1286 = vpop.f32.mrf.mxu0
          %v1287 = vadd.f32 %v1267, %v1286
          %1288 = vdwg.mxu0
          %1289 = vmatpush.msra.mxu0 %v982
          %1290 = vmatpush.msra.mxu0 %v980
          %1291 = vmatpush.msra.mxu0 %v978
          %1292 = vmatpush.msra.mxu0 %v976
          %1293 = vmatpush.msra.mxu0 %v974
          %1294 = vmatpush.msra.mxu0 %v972
          %1295 = vmatpush.msra.mxu0 %v970
          %1296 = vmatpush.msra.mxu0 %v968
          %1297 = vmatpush.msra.mxu0 %v966
          %1298 = vmatpush.msra.mxu0 %v964
          %1299 = vmatpush.msra.mxu0 %v962
          %1300 = vmatpush.msra.mxu0 %v960
          %1301 = vmatpush.msra.mxu0 %v958
          %1302 = vmatpush.msra.mxu0 %v956
          %1303 = vmatpush.msra.mxu0 %v954
          %1304 = vmatpush.msra.mxu0 %v952
          %1305 = vmatmul.f32.gmra.mxu0 %v725
          %v1306 = vpop.f32.mrf.mxu0
          %v1307 = vadd.f32 %v1287, %v1306
          %1308 = vdwg.mxu0
          %v1309 = vld [vmem:[#allocation12] sm:$0xff]
          %v1310 = vld [vmem:[#allocation12 + $0x8] sm:$0xff]
          %v1311 = vld [vmem:[#allocation12 + $0x10] sm:$0xff]
          %v1312 = vld [vmem:[#allocation12 + $0x18] sm:$0xff]
          %v1313 = vld [vmem:[#allocation12 + $0x20] sm:$0xff]
          %v1314 = vld [vmem:[#allocation12 + $0x28] sm:$0xff]
          %v1315 = vld [vmem:[#allocation12 + $0x30] sm:$0xff]
          %v1316 = vld [vmem:[#allocation12 + $0x38] sm:$0xff]
          %v1317 = vld [vmem:[#allocation12 + $0x40] sm:$0xff]
          %v1318 = vld [vmem:[#allocation12 + $0x48] sm:$0xff]
          %v1319 = vld [vmem:[#allocation12 + $0x50] sm:$0xff]
          %v1320 = vld [vmem:[#allocation12 + $0x58] sm:$0xff]
          %v1321 = vld [vmem:[#allocation12 + $0x60] sm:$0xff]
          %v1322 = vld [vmem:[#allocation12 + $0x68] sm:$0xff]
          %v1323 = vld [vmem:[#allocation12 + $0x70] sm:$0xff]
          %v1324 = vld [vmem:[#allocation12 + $0x78] sm:$0xff]
          %v1325 = vld [vmem:[#allocation12 + $0x80] sm:$0xff]
          %v1326 = vld [vmem:[#allocation12 + $0x88] sm:$0xff]
          %v1327 = vld [vmem:[#allocation12 + $0x90] sm:$0xff]
          %v1328 = vld [vmem:[#allocation12 + $0x98] sm:$0xff]
          %v1329 = vld [vmem:[#allocation12 + $0xa0] sm:$0xff]
          %v1330 = vld [vmem:[#allocation12 + $0xa8] sm:$0xff]
          %v1331 = vld [vmem:[#allocation12 + $0xb0] sm:$0xff]
          %v1332 = vld [vmem:[#allocation12 + $0xb8] sm:$0xff]
          %v1333 = vld [vmem:[#allocation12 + $0xc0] sm:$0xff]
          %v1334 = vld [vmem:[#allocation12 + $0xc8] sm:$0xff]
          %v1335 = vld [vmem:[#allocation12 + $0xd0] sm:$0xff]
          %v1336 = vld [vmem:[#allocation12 + $0xd8] sm:$0xff]
          %v1337 = vld [vmem:[#allocation12 + $0xe0] sm:$0xff]
          %v1338 = vld [vmem:[#allocation12 + $0xe8] sm:$0xff]
          %v1339 = vld [vmem:[#allocation12 + $0xf0] sm:$0xff]
          %v1340 = vld [vmem:[#allocation12 + $0xf8] sm:$0xff]
          %v1341 = vld [vmem:[%s6] sm:$0x1]
          %v1343 = vperm.slane %v1341, 0
          %1345 = vmatpush.msra.mxu0 %v1324
          %1346 = vmatpush.msra.mxu0 %v1323
          %1347 = vmatpush.msra.mxu0 %v1322
          %1348 = vmatpush.msra.mxu0 %v1321
          %1349 = vmatpush.msra.mxu0 %v1320
          %1350 = vmatpush.msra.mxu0 %v1319
          %1351 = vmatpush.msra.mxu0 %v1318
          %1352 = vmatpush.msra.mxu0 %v1317
          %1353 = vmatpush.msra.mxu0 %v1316
          %1354 = vmatpush.msra.mxu0 %v1315
          %1355 = vmatpush.msra.mxu0 %v1314
          %1356 = vmatpush.msra.mxu0 %v1313
          %1357 = vmatpush.msra.mxu0 %v1312
          %1358 = vmatpush.msra.mxu0 %v1311
          %1359 = vmatpush.msra.mxu0 %v1310
          %1360 = vmatpush.msra.mxu0 %v1309
          %1361 = vmatmul.f32.gmra.mxu0 %v1147
          %v1362 = vpop.f32.mrf.mxu0
          %v1363 = vadd.f32 %v1343, %v1362
          %1364 = vdwg.mxu0
          %1365 = vmatpush.msra.mxu0 %v1340
          %1366 = vmatpush.msra.mxu0 %v1339
          %1367 = vmatpush.msra.mxu0 %v1338
          %1368 = vmatpush.msra.mxu0 %v1337
          %1369 = vmatpush.msra.mxu0 %v1336
          %1370 = vmatpush.msra.mxu0 %v1335
          %1371 = vmatpush.msra.mxu0 %v1334
          %1372 = vmatpush.msra.mxu0 %v1333
          %1373 = vmatpush.msra.mxu0 %v1332
          %1374 = vmatpush.msra.mxu0 %v1331
          %1375 = vmatpush.msra.mxu0 %v1330
          %1376 = vmatpush.msra.mxu0 %v1329
          %1377 = vmatpush.msra.mxu0 %v1328
          %1378 = vmatpush.msra.mxu0 %v1327
          %1379 = vmatpush.msra.mxu0 %v1326
          %1380 = vmatpush.msra.mxu0 %v1325
          %1381 = vmatmul.f32.gmra.mxu0 %v1307
          %v1382 = vpop.f32.mrf.mxu0
          %v1383 = vadd.f32 %v1363, %v1382
          %1384 = vdwg.mxu0
          %1385 = vst [vmem:[#allocation13] sm:$0x3] %v1383
        $region84: #{tpu_custom_call.1} parent=47 // pred_fallthru
          _
        // Predicated region
        $region85: #{tpu_custom_call.1} parent=47 // pred_check
          %p1386 = pneg %p219
        $region86: #{tpu_custom_call.1} parent=47 // pred_check_branch
          %1388 = sbr.rel (%p1386) target = $region88
        $region87: #{tpu_custom_call.1} parent=47 // pred_region
          %1390 = vsyncadd [#allocation6], 0
          %s1391 = smul.addr %s29, 2
          %s1392 = scalar_lea.hbm %s7, %s1391
          %s1394 = sshll.u32 [#allocation13], 4
          %s1395 = int_to_ptr.vmem [resolvable:$true] %s1394
          %s1396 = sshll.u32 %s1392, 4
          %s1397 = int_to_ptr.hbm [resolvable:$true] %s1396
          %1399 = dma.vmem_to_hbm [thread:$0]  %s1395, 32, %s1397, [#allocation6]
        $region88: #{tpu_custom_call.1} parent=47 // pred_fallthru
          _
        // Predicated region
        $region89: #{tpu_custom_call.1} parent=47 // pred_check
          %p1400 = pneg %p219
        $region90: #{tpu_custom_call.1} parent=47 // pred_check_branch
          %1402 = sbr.rel (%p1400) target = $region92
        $region91: #{tpu_custom_call.1} parent=47 // pred_region
          %1404 = dma.done [#allocation6], 32
        $region92: #{tpu_custom_call.1} parent=47 // pred_fallthru
          _
      $region48: #{tpu_custom_call.1} parent=5 // pred_fallthru
        _
      %p1405 = scmp.le.s32.totalorder 2, %s19
      // Predicated region
      $region93: #{tpu_custom_call.1} parent=5 // pred_check
        %p1406 = pneg %p1405
      $region94: #{tpu_custom_call.1} parent=5 // pred_check_branch
        %1408 = sbr.rel (%p1406) target = $region96
      $region95: #{tpu_custom_call.1} parent=5 // pred_region
        %s1409 = ssub.s32 %s19, 2
      $region96: #{tpu_custom_call.1} parent=5 // pred_fallthru
        _
    $region6: #{tpu_custom_call.1} parent=1 // loop_footer
      %s23 = sadd.s32 1, %s19
    $region7: #{tpu_custom_call.1} parent=1 // loop_footer_branch
      %18 = sbr.rel target = $region3
    $region8: #{tpu_custom_call.1} parent=1 // loop_exit
      _
    %1410 = vsyncpa [#allocation5], 1
    %s1411 = scalar_lea.sflag [#allocation5], 1
    %1412 = vsyncpa %s1411, 1
    %1413 = vsyncpa [#allocation8], 1
    %1414 = vsyncpa [#allocation11], 1
    %1415 = vsyncpa [#allocation6], 1
    %s1416 = scalar_lea.sflag [#allocation6], 1
    %1417 = vsyncpa %s1416, 1

</llo_original>
